<compile_context>
chip_gen: v7x
topology: tpu7x:2x2x1
jax: 0.10.0
libtpu: 0.0.40
codegen_flags: <defaults>
</compile_context>

<pallas_src>
import functools

import jax
import jax.numpy as jnp
from jax.experimental import pallas as pl
from jax.experimental.pallas import tpu as pltpu

NUM_POINTS = 256          # synthetic choice (global in the original code)
P4 = NUM_POINTS // 4      # 64
P2 = NUM_POINTS // 2      # 128
LANE = 128                # vreg lane width
D_TYPE = jnp.float32


def _mlp_kernel(x_ref,
                w1, b1,
                ra_w1, ra_b1, ra_w2, ra_b2, ra_w3, ra_b3,
                w2, b2,
                rb_w1, rb_b1, rb_w2, rb_b2, rb_w3, rb_b3,
                w3, b3,
                o_ref):
    """Whole MLP (linear1 -> resblock1 -> linear2 -> resblock2 -> linear3) on one row-tile."""

    def lin_relu(h, w_ref, b_ref):
        w = w_ref[...]
        acc = jnp.dot(h.astype(w.dtype), w, preferred_element_type=jnp.float32)
        return jnp.maximum(acc + b_ref[...].astype(jnp.float32), 0.0)

    h = lin_relu(x_ref[...].astype(jnp.float32), w1, b1)      # relu(linear1(x))

    res = h                                                    # resblock1
    h = lin_relu(h, ra_w1, ra_b1)
    h = lin_relu(h, ra_w2, ra_b2)
    h = lin_relu(h, ra_w3, ra_b3)
    h = h + res

    h = lin_relu(h, w2, b2)                                    # relu(linear2(x))

    res = h                                                    # resblock2
    h = lin_relu(h, rb_w1, rb_b1)
    h = lin_relu(h, rb_w2, rb_b2)
    h = lin_relu(h, rb_w3, rb_b3)
    h = h + res

    h = lin_relu(h, w3, b3)                                    # relu(linear3(x))

    o_ref[...] = h.astype(o_ref.dtype)


def _linear_params(key, in_dim, out_dim):
    """Deterministic nn.Linear-like init. Weight stored transposed: (in, out). Bias: (1, out)."""
    kw, kb = jax.random.split(key)
    bound = 1.0 / jnp.sqrt(jnp.float32(in_dim))
    w_t = jax.random.uniform(kw, (in_dim, out_dim), D_TYPE, -bound, bound)
    b = jax.random.uniform(kb, (1, out_dim), D_TYPE, -bound, bound)
    return w_t, b


def init_params(key, input_size):
    dims = [
        (input_size, P4),                # linear1
        (P4, P4), (P4, P4), (P4, P4),    # resblock1
        (P4, P2),                        # linear2
        (P2, P2), (P2, P2), (P2, P2),    # resblock2
        (P2, NUM_POINTS),                # linear3
    ]
    keys = jax.random.split(key, len(dims))
    params = []
    for k, (din, dout) in zip(keys, dims):
        params.extend(_linear_params(k, din, dout))
    return params  # flat list: [w1, b1, ra_w1, ra_b1, ..., w3, b3]


def prepare_params(params, compute_dtype=jnp.float32):
    """Pad 64-wide hidden dims to 128 lanes (exact: zero columns/rows/biases) and
    cast weights to the matmul dtype. Biases stay f32 (added after f32 accumulation)."""
    prepared = []
    n_layers = len(params) // 2
    for li in range(n_layers):
        w, b = params[2 * li], params[2 * li + 1]
        din, dout = w.shape
        din_p = din if li == 0 else max(din, LANE)   # never pad the real input dim
        dout_p = max(dout, LANE)
        w_p = jnp.pad(w, ((0, din_p - din), (0, dout_p - dout))).astype(compute_dtype)
        b_p = jnp.pad(b, ((0, 0), (0, dout_p - dout))).astype(jnp.float32)
        prepared.append(w_p)
        prepared.append(b_p)
    return prepared


@functools.partial(jax.jit, static_argnames=("row_tile",))
def model_map_predict_forward(x, lengths, params, *, row_tile=512):
    """x: (batch, seq, input_size). params: output of prepare_params().
    Returns (seq, batch, NUM_POINTS), matching x.transpose(0, 1) in the PyTorch code."""
    del lengths  # unused in the PyTorch forward as well
    B, S, I = x.shape
    M = S * B

    # Fold the final transpose(0, 1) into the (narrow) input instead of the (wide)
    # output: transpose costs ~I/NUM_POINTS (= 8x less) HBM traffic here, and the
    # kernel then emits rows already in seq-major order.
    xt = jnp.transpose(x, (1, 0, 2)).reshape(M, I)

    # Row tile: large (amortizes per-step overhead, saturates MXU along M), but
    # clamped to the padded problem size; always a multiple of 8 sublanes.
    tile = min(row_tile, pl.cdiv(M, 8) * 8)
    tile = max(8, (tile // 8) * 8)
    M_pad = pl.cdiv(M, tile) * tile
    if M_pad != M:
        xt = jnp.pad(xt, ((0, M_pad - M), (0, 0)))

    grid = (M_pad // tile,)

    # Parameters: full-array blocks, same block every grid step (loaded once).
    param_specs = [pl.BlockSpec(p.shape, lambda i: (0, 0)) for p in params]

    out = pl.pallas_call(
        _mlp_kernel,
        out_shape=jax.ShapeDtypeStruct((M_pad, NUM_POINTS), D_TYPE),
        grid_spec=pltpu.PrefetchScalarGridSpec(
            num_scalar_prefetch=0,
            grid=grid,
            in_specs=[pl.BlockSpec((tile, I), lambda i: (i, 0))] + param_specs,
            out_specs=pl.BlockSpec((tile, NUM_POINTS), lambda i: (i, 0)),
        ),
        compiler_params=pltpu.CompilerParams(
            dimension_semantics=("parallel",)),
    )(xt, *params)

    # Rows are already seq-major: reshape is free, no output transpose needed.
    out = out[:M].reshape(S, B, NUM_POINTS)
    return out


def _reference_forward(x, params, compute_dtype=jnp.float32):
    """Pure-JAX reference mirroring the PyTorch forward (and the kernel's matmul
    precision when compute_dtype != float32)."""
    (w1, b1,
     ra_w1, ra_b1, ra_w2, ra_b2, ra_w3, ra_b3,
     w2, b2,
     rb_w1, rb_b1, rb_w2, rb_b2, rb_w3, rb_b3,
     w3, b3) = params

    def lin_relu(h, w, b):
        acc = jnp.dot(h.astype(compute_dtype), w.astype(compute_dtype),
                      preferred_element_type=jnp.float32)
        return jnp.maximum(acc + b, 0.0)

    h = lin_relu(x, w1, b1)
    res = h
    h = lin_relu(h, ra_w1, ra_b1)
    h = lin_relu(h, ra_w2, ra_b2)
    h = lin_relu(h, ra_w3, ra_b3)
    h = h + res
    h = lin_relu(h, w2, b2)
    res = h
    h = lin_relu(h, rb_w1, rb_b1)
    h = lin_relu(h, rb_w2, rb_b2)
    h = lin_relu(h, rb_w3, rb_b3)
    h = h + res
    h = lin_relu(h, w3, b3)
    return jnp.transpose(h, (1, 0, 2))


if __name__ == "__main__":
    key = jax.random.PRNGKey(0)
    k_x, k_len, k_p = jax.random.split(key, 3)

    batch, seq, input_size = 2, 8, 32
    x = jax.random.normal(k_x, (batch, seq, input_size), D_TYPE)
    lengths = jnp.full((batch,), seq, jnp.int32)  # unused (matches PyTorch forward)

    params = init_params(k_p, input_size)

    # --- f32 path: exact vs reference ---
    params_f32 = prepare_params(params, jnp.float32)
    out = jax.block_until_ready(model_map_predict_forward(x, lengths, params_f32))
    ref = _reference_forward(x, params, jnp.float32)
    assert out.shape == (seq, batch, NUM_POINTS), out.shape
    assert jnp.allclose(out, ref, atol=1e-5, rtol=1e-5), "f32 mismatch vs reference"

    # --- bf16-weight path (MXU-native rate); validated vs a same-precision reference ---
    params_bf16 = prepare_params(params, jnp.bfloat16)
    out_bf16 = jax.block_until_ready(model_map_predict_forward(x, lengths, params_bf16))
    ref_bf16 = _reference_forward(x, params, jnp.bfloat16)
    assert jnp.allclose(out_bf16, ref_bf16, atol=1e-2, rtol=1e-2), "bf16 mismatch vs bf16 reference"

    print("KERNEL_OK")
</pallas_src>

<mosaic_0001>
module attributes {stable_mosaic.version = 11 : i64} {
  func.func @_mlp_kernel(%arg0: i32, %arg1: memref<16x32xf32, #tpu.memory_space<vmem>>, %arg2: memref<32x128xf32, #tpu.memory_space<vmem>>, %arg3: memref<1x128xf32, #tpu.memory_space<vmem>>, %arg4: memref<128x128xf32, #tpu.memory_space<vmem>>, %arg5: memref<1x128xf32, #tpu.memory_space<vmem>>, %arg6: memref<128x128xf32, #tpu.memory_space<vmem>>, %arg7: memref<1x128xf32, #tpu.memory_space<vmem>>, %arg8: memref<128x128xf32, #tpu.memory_space<vmem>>, %arg9: memref<1x128xf32, #tpu.memory_space<vmem>>, %arg10: memref<128x128xf32, #tpu.memory_space<vmem>>, %arg11: memref<1x128xf32, #tpu.memory_space<vmem>>, %arg12: memref<128x128xf32, #tpu.memory_space<vmem>>, %arg13: memref<1x128xf32, #tpu.memory_space<vmem>>, %arg14: memref<128x128xf32, #tpu.memory_space<vmem>>, %arg15: memref<1x128xf32, #tpu.memory_space<vmem>>, %arg16: memref<128x128xf32, #tpu.memory_space<vmem>>, %arg17: memref<1x128xf32, #tpu.memory_space<vmem>>, %arg18: memref<128x256xf32, #tpu.memory_space<vmem>>, %arg19: memref<1x256xf32, #tpu.memory_space<vmem>>, %arg20: memref<16x256xf32, #tpu.memory_space<vmem>>) attributes {dimension_semantics = [#tpu.dimension_semantics<parallel>], iteration_bounds = array<i64: 1>, scalar_prefetch = 0 : i64, scratch_operands = 0 : i64, tpu.core_type = #tpu.core_type<tc>, window_params = [{transform_indices = @transform_0, window_bounds = array<i64: 16, 32>}, {pipeline_mode = #tpu.pipeline_mode<synchronous>, transform_indices = @transform_1, window_bounds = array<i64: 32, 128>}, {pipeline_mode = #tpu.pipeline_mode<synchronous>, transform_indices = @transform_2, window_bounds = array<i64: 1, 128>}, {pipeline_mode = #tpu.pipeline_mode<synchronous>, transform_indices = @transform_3, window_bounds = array<i64: 128, 128>}, {pipeline_mode = #tpu.pipeline_mode<synchronous>, transform_indices = @transform_4, window_bounds = array<i64: 1, 128>}, {pipeline_mode = #tpu.pipeline_mode<synchronous>, transform_indices = @transform_5, window_bounds = array<i64: 128, 128>}, {pipeline_mode = #tpu.pipeline_mode<synchronous>, transform_indices = @transform_6, window_bounds = array<i64: 1, 128>}, {pipeline_mode = #tpu.pipeline_mode<synchronous>, transform_indices = @transform_7, window_bounds = array<i64: 128, 128>}, {pipeline_mode = #tpu.pipeline_mode<synchronous>, transform_indices = @transform_8, window_bounds = array<i64: 1, 128>}, {pipeline_mode = #tpu.pipeline_mode<synchronous>, transform_indices = @transform_9, window_bounds = array<i64: 128, 128>}, {pipeline_mode = #tpu.pipeline_mode<synchronous>, transform_indices = @transform_10, window_bounds = array<i64: 1, 128>}, {pipeline_mode = #tpu.pipeline_mode<synchronous>, transform_indices = @transform_11, window_bounds = array<i64: 128, 128>}, {pipeline_mode = #tpu.pipeline_mode<synchronous>, transform_indices = @transform_12, window_bounds = array<i64: 1, 128>}, {pipeline_mode = #tpu.pipeline_mode<synchronous>, transform_indices = @transform_13, window_bounds = array<i64: 128, 128>}, {pipeline_mode = #tpu.pipeline_mode<synchronous>, transform_indices = @transform_14, window_bounds = array<i64: 1, 128>}, {pipeline_mode = #tpu.pipeline_mode<synchronous>, transform_indices = @transform_15, window_bounds = array<i64: 128, 128>}, {pipeline_mode = #tpu.pipeline_mode<synchronous>, transform_indices = @transform_16, window_bounds = array<i64: 1, 128>}, {pipeline_mode = #tpu.pipeline_mode<synchronous>, transform_indices = @transform_17, window_bounds = array<i64: 128, 256>}, {pipeline_mode = #tpu.pipeline_mode<synchronous>, transform_indices = @transform_18, window_bounds = array<i64: 1, 256>}, {transform_indices = @transform_19, window_bounds = array<i64: 16, 256>}]} {
    %c0 = arith.constant 0 : index
    %c0_0 = arith.constant 0 : index
    %0 = vector.load %arg1[%c0, %c0_0] : memref<16x32xf32, #tpu.memory_space<vmem>>, vector<16x32xf32>
    %c0_1 = arith.constant 0 : index
    %c0_2 = arith.constant 0 : index
    %1 = vector.load %arg2[%c0_1, %c0_2] : memref<32x128xf32, #tpu.memory_space<vmem>>, vector<32x128xf32>
    %cst = arith.constant dense<0.000000e+00> : vector<16x128xf32>
    %2 = tpu.matmul %0, %1, %cst {dimension_numbers = #tpu.dot_dimension_numbers<[1], [0], [0], [1], [0, 0, 1, 1], [], []>} : vector<16x32xf32>, vector<32x128xf32>, vector<16x128xf32> -> vector<16x128xf32>
    %c0_3 = arith.constant 0 : index
    %c0_4 = arith.constant 0 : index
    %3 = vector.load %arg3[%c0_3, %c0_4] : memref<1x128xf32, #tpu.memory_space<vmem>>, vector<1x128xf32>
    %4 = vector.broadcast %3 : vector<1x128xf32> to vector<16x128xf32>
    %5 = arith.addf %2, %4 : vector<16x128xf32>
    %cst_5 = arith.constant 0.000000e+00 : f32
    %6 = vector.broadcast %cst_5 : f32 to vector<16x128xf32>
    %7 = arith.maximumf %5, %6 : vector<16x128xf32>
    %c0_6 = arith.constant 0 : index
    %c0_7 = arith.constant 0 : index
    %8 = vector.load %arg4[%c0_6, %c0_7] : memref<128x128xf32, #tpu.memory_space<vmem>>, vector<128x128xf32>
    %cst_8 = arith.constant dense<0.000000e+00> : vector<16x128xf32>
    %9 = tpu.matmul %7, %8, %cst_8 {dimension_numbers = #tpu.dot_dimension_numbers<[1], [0], [0], [1], [0, 0, 1, 1], [], []>} : vector<16x128xf32>, vector<128x128xf32>, vector<16x128xf32> -> vector<16x128xf32>
    %c0_9 = arith.constant 0 : index
    %c0_10 = arith.constant 0 : index
    %10 = vector.load %arg5[%c0_9, %c0_10] : memref<1x128xf32, #tpu.memory_space<vmem>>, vector<1x128xf32>
    %11 = vector.broadcast %10 : vector<1x128xf32> to vector<16x128xf32>
    %12 = arith.addf %9, %11 : vector<16x128xf32>
    %cst_11 = arith.constant 0.000000e+00 : f32
    %13 = vector.broadcast %cst_11 : f32 to vector<16x128xf32>
    %14 = arith.maximumf %12, %13 : vector<16x128xf32>
    %c0_12 = arith.constant 0 : index
    %c0_13 = arith.constant 0 : index
    %15 = vector.load %arg6[%c0_12, %c0_13] : memref<128x128xf32, #tpu.memory_space<vmem>>, vector<128x128xf32>
    %cst_14 = arith.constant dense<0.000000e+00> : vector<16x128xf32>
    %16 = tpu.matmul %14, %15, %cst_14 {dimension_numbers = #tpu.dot_dimension_numbers<[1], [0], [0], [1], [0, 0, 1, 1], [], []>} : vector<16x128xf32>, vector<128x128xf32>, vector<16x128xf32> -> vector<16x128xf32>
    %c0_15 = arith.constant 0 : index
    %c0_16 = arith.constant 0 : index
    %17 = vector.load %arg7[%c0_15, %c0_16] : memref<1x128xf32, #tpu.memory_space<vmem>>, vector<1x128xf32>
    %18 = vector.broadcast %17 : vector<1x128xf32> to vector<16x128xf32>
    %19 = arith.addf %16, %18 : vector<16x128xf32>
    %cst_17 = arith.constant 0.000000e+00 : f32
    %20 = vector.broadcast %cst_17 : f32 to vector<16x128xf32>
    %21 = arith.maximumf %19, %20 : vector<16x128xf32>
    %c0_18 = arith.constant 0 : index
    %c0_19 = arith.constant 0 : index
    %22 = vector.load %arg8[%c0_18, %c0_19] : memref<128x128xf32, #tpu.memory_space<vmem>>, vector<128x128xf32>
    %cst_20 = arith.constant dense<0.000000e+00> : vector<16x128xf32>
    %23 = tpu.matmul %21, %22, %cst_20 {dimension_numbers = #tpu.dot_dimension_numbers<[1], [0], [0], [1], [0, 0, 1, 1], [], []>} : vector<16x128xf32>, vector<128x128xf32>, vector<16x128xf32> -> vector<16x128xf32>
    %c0_21 = arith.constant 0 : index
    %c0_22 = arith.constant 0 : index
    %24 = vector.load %arg9[%c0_21, %c0_22] : memref<1x128xf32, #tpu.memory_space<vmem>>, vector<1x128xf32>
    %25 = vector.broadcast %24 : vector<1x128xf32> to vector<16x128xf32>
    %26 = arith.addf %23, %25 : vector<16x128xf32>
    %cst_23 = arith.constant 0.000000e+00 : f32
    %27 = vector.broadcast %cst_23 : f32 to vector<16x128xf32>
    %28 = arith.maximumf %26, %27 : vector<16x128xf32>
    %29 = arith.addf %28, %7 : vector<16x128xf32>
    %c0_24 = arith.constant 0 : index
    %c0_25 = arith.constant 0 : index
    %30 = vector.load %arg10[%c0_24, %c0_25] : memref<128x128xf32, #tpu.memory_space<vmem>>, vector<128x128xf32>
    %cst_26 = arith.constant dense<0.000000e+00> : vector<16x128xf32>
    %31 = tpu.matmul %29, %30, %cst_26 {dimension_numbers = #tpu.dot_dimension_numbers<[1], [0], [0], [1], [0, 0, 1, 1], [], []>} : vector<16x128xf32>, vector<128x128xf32>, vector<16x128xf32> -> vector<16x128xf32>
    %c0_27 = arith.constant 0 : index
    %c0_28 = arith.constant 0 : index
    %32 = vector.load %arg11[%c0_27, %c0_28] : memref<1x128xf32, #tpu.memory_space<vmem>>, vector<1x128xf32>
    %33 = vector.broadcast %32 : vector<1x128xf32> to vector<16x128xf32>
    %34 = arith.addf %31, %33 : vector<16x128xf32>
    %cst_29 = arith.constant 0.000000e+00 : f32
    %35 = vector.broadcast %cst_29 : f32 to vector<16x128xf32>
    %36 = arith.maximumf %34, %35 : vector<16x128xf32>
    %c0_30 = arith.constant 0 : index
    %c0_31 = arith.constant 0 : index
    %37 = vector.load %arg12[%c0_30, %c0_31] : memref<128x128xf32, #tpu.memory_space<vmem>>, vector<128x128xf32>
    %cst_32 = arith.constant dense<0.000000e+00> : vector<16x128xf32>
    %38 = tpu.matmul %36, %37, %cst_32 {dimension_numbers = #tpu.dot_dimension_numbers<[1], [0], [0], [1], [0, 0, 1, 1], [], []>} : vector<16x128xf32>, vector<128x128xf32>, vector<16x128xf32> -> vector<16x128xf32>
    %c0_33 = arith.constant 0 : index
    %c0_34 = arith.constant 0 : index
    %39 = vector.load %arg13[%c0_33, %c0_34] : memref<1x128xf32, #tpu.memory_space<vmem>>, vector<1x128xf32>
    %40 = vector.broadcast %39 : vector<1x128xf32> to vector<16x128xf32>
    %41 = arith.addf %38, %40 : vector<16x128xf32>
    %cst_35 = arith.constant 0.000000e+00 : f32
    %42 = vector.broadcast %cst_35 : f32 to vector<16x128xf32>
    %43 = arith.maximumf %41, %42 : vector<16x128xf32>
    %c0_36 = arith.constant 0 : index
    %c0_37 = arith.constant 0 : index
    %44 = vector.load %arg14[%c0_36, %c0_37] : memref<128x128xf32, #tpu.memory_space<vmem>>, vector<128x128xf32>
    %cst_38 = arith.constant dense<0.000000e+00> : vector<16x128xf32>
    %45 = tpu.matmul %43, %44, %cst_38 {dimension_numbers = #tpu.dot_dimension_numbers<[1], [0], [0], [1], [0, 0, 1, 1], [], []>} : vector<16x128xf32>, vector<128x128xf32>, vector<16x128xf32> -> vector<16x128xf32>
    %c0_39 = arith.constant 0 : index
    %c0_40 = arith.constant 0 : index
    %46 = vector.load %arg15[%c0_39, %c0_40] : memref<1x128xf32, #tpu.memory_space<vmem>>, vector<1x128xf32>
    %47 = vector.broadcast %46 : vector<1x128xf32> to vector<16x128xf32>
    %48 = arith.addf %45, %47 : vector<16x128xf32>
    %cst_41 = arith.constant 0.000000e+00 : f32
    %49 = vector.broadcast %cst_41 : f32 to vector<16x128xf32>
    %50 = arith.maximumf %48, %49 : vector<16x128xf32>
    %c0_42 = arith.constant 0 : index
    %c0_43 = arith.constant 0 : index
    %51 = vector.load %arg16[%c0_42, %c0_43] : memref<128x128xf32, #tpu.memory_space<vmem>>, vector<128x128xf32>
    %cst_44 = arith.constant dense<0.000000e+00> : vector<16x128xf32>
    %52 = tpu.matmul %50, %51, %cst_44 {dimension_numbers = #tpu.dot_dimension_numbers<[1], [0], [0], [1], [0, 0, 1, 1], [], []>} : vector<16x128xf32>, vector<128x128xf32>, vector<16x128xf32> -> vector<16x128xf32>
    %c0_45 = arith.constant 0 : index
    %c0_46 = arith.constant 0 : index
    %53 = vector.load %arg17[%c0_45, %c0_46] : memref<1x128xf32, #tpu.memory_space<vmem>>, vector<1x128xf32>
    %54 = vector.broadcast %53 : vector<1x128xf32> to vector<16x128xf32>
    %55 = arith.addf %52, %54 : vector<16x128xf32>
    %cst_47 = arith.constant 0.000000e+00 : f32
    %56 = vector.broadcast %cst_47 : f32 to vector<16x128xf32>
    %57 = arith.maximumf %55, %56 : vector<16x128xf32>
    %58 = arith.addf %57, %36 : vector<16x128xf32>
    %c0_48 = arith.constant 0 : index
    %c0_49 = arith.constant 0 : index
    %59 = vector.load %arg18[%c0_48, %c0_49] : memref<128x256xf32, #tpu.memory_space<vmem>>, vector<128x256xf32>
    %cst_50 = arith.constant dense<0.000000e+00> : vector<16x256xf32>
    %60 = tpu.matmul %58, %59, %cst_50 {dimension_numbers = #tpu.dot_dimension_numbers<[1], [0], [0], [1], [0, 0, 1, 1], [], []>} : vector<16x128xf32>, vector<128x256xf32>, vector<16x256xf32> -> vector<16x256xf32>
    %c0_51 = arith.constant 0 : index
    %c0_52 = arith.constant 0 : index
    %61 = vector.load %arg19[%c0_51, %c0_52] : memref<1x256xf32, #tpu.memory_space<vmem>>, vector<1x256xf32>
    %62 = vector.broadcast %61 : vector<1x256xf32> to vector<16x256xf32>
    %63 = arith.addf %60, %62 : vector<16x256xf32>
    %cst_53 = arith.constant 0.000000e+00 : f32
    %64 = vector.broadcast %cst_53 : f32 to vector<16x256xf32>
    %65 = arith.maximumf %63, %64 : vector<16x256xf32>
    %c0_54 = arith.constant 0 : index
    %c0_55 = arith.constant 0 : index
    %66 = vector.load %arg20[%c0_54, %c0_55] : memref<16x256xf32, #tpu.memory_space<vmem>>, vector<16x256xf32>
    tpu.vector_store %arg20[%c0_54, %c0_55], %65 {strides = array<i32>} : memref<16x256xf32, #tpu.memory_space<vmem>>, vector<16x256xf32>,
    return
  }
  func.func @transform_0(%arg0: i32) -> (i32, i32) {
    %c0_i32 = arith.constant 0 : i32
    %c0_i32_0 = arith.constant 0 : i32
    return %arg0, %c0_i32 : i32, i32
  }
  func.func @transform_1(%arg0: i32) -> (i32, i32) {
    %c0_i32 = arith.constant 0 : i32
    %c0_i32_0 = arith.constant 0 : i32
    %c0_i32_1 = arith.constant 0 : i32
    return %c0_i32, %c0_i32_0 : i32, i32
  }
  func.func @transform_2(%arg0: i32) -> (i32, i32) {
    %c0_i32 = arith.constant 0 : i32
    %c0_i32_0 = arith.constant 0 : i32
    %c0_i32_1 = arith.constant 0 : i32
    return %c0_i32, %c0_i32_0 : i32, i32
  }
  func.func @transform_3(%arg0: i32) -> (i32, i32) {
    %c0_i32 = arith.constant 0 : i32
    %c0_i32_0 = arith.constant 0 : i32
    %c0_i32_1 = arith.constant 0 : i32
    return %c0_i32, %c0_i32_0 : i32, i32
  }
  func.func @transform_4(%arg0: i32) -> (i32, i32) {
    %c0_i32 = arith.constant 0 : i32
    %c0_i32_0 = arith.constant 0 : i32
    %c0_i32_1 = arith.constant 0 : i32
    return %c0_i32, %c0_i32_0 : i32, i32
  }
  func.func @transform_5(%arg0: i32) -> (i32, i32) {
    %c0_i32 = arith.constant 0 : i32
    %c0_i32_0 = arith.constant 0 : i32
    %c0_i32_1 = arith.constant 0 : i32
    return %c0_i32, %c0_i32_0 : i32, i32
  }
  func.func @transform_6(%arg0: i32) -> (i32, i32) {
    %c0_i32 = arith.constant 0 : i32
    %c0_i32_0 = arith.constant 0 : i32
    %c0_i32_1 = arith.constant 0 : i32
    return %c0_i32, %c0_i32_0 : i32, i32
  }
  func.func @transform_7(%arg0: i32) -> (i32, i32) {
    %c0_i32 = arith.constant 0 : i32
    %c0_i32_0 = arith.constant 0 : i32
    %c0_i32_1 = arith.constant 0 : i32
    return %c0_i32, %c0_i32_0 : i32, i32
  }
  func.func @transform_8(%arg0: i32) -> (i32, i32) {
    %c0_i32 = arith.constant 0 : i32
    %c0_i32_0 = arith.constant 0 : i32
    %c0_i32_1 = arith.constant 0 : i32
    return %c0_i32, %c0_i32_0 : i32, i32
  }
  func.func @transform_9(%arg0: i32) -> (i32, i32) {
    %c0_i32 = arith.constant 0 : i32
    %c0_i32_0 = arith.constant 0 : i32
    %c0_i32_1 = arith.constant 0 : i32
    return %c0_i32, %c0_i32_0 : i32, i32
  }
  func.func @transform_10(%arg0: i32) -> (i32, i32) {
    %c0_i32 = arith.constant 0 : i32
    %c0_i32_0 = arith.constant 0 : i32
    %c0_i32_1 = arith.constant 0 : i32
    return %c0_i32, %c0_i32_0 : i32, i32
  }
  func.func @transform_11(%arg0: i32) -> (i32, i32) {
    %c0_i32 = arith.constant 0 : i32
    %c0_i32_0 = arith.constant 0 : i32
    %c0_i32_1 = arith.constant 0 : i32
    return %c0_i32, %c0_i32_0 : i32, i32
  }
  func.func @transform_12(%arg0: i32) -> (i32, i32) {
    %c0_i32 = arith.constant 0 : i32
    %c0_i32_0 = arith.constant 0 : i32
    %c0_i32_1 = arith.constant 0 : i32
    return %c0_i32, %c0_i32_0 : i32, i32
  }
  func.func @transform_13(%arg0: i32) -> (i32, i32) {
    %c0_i32 = arith.constant 0 : i32
    %c0_i32_0 = arith.constant 0 : i32
    %c0_i32_1 = arith.constant 0 : i32
    return %c0_i32, %c0_i32_0 : i32, i32
  }
  func.func @transform_14(%arg0: i32) -> (i32, i32) {
    %c0_i32 = arith.constant 0 : i32
    %c0_i32_0 = arith.constant 0 : i32
    %c0_i32_1 = arith.constant 0 : i32
    return %c0_i32, %c0_i32_0 : i32, i32
  }
  func.func @transform_15(%arg0: i32) -> (i32, i32) {
    %c0_i32 = arith.constant 0 : i32
    %c0_i32_0 = arith.constant 0 : i32
    %c0_i32_1 = arith.constant 0 : i32
    return %c0_i32, %c0_i32_0 : i32, i32
  }
  func.func @transform_16(%arg0: i32) -> (i32, i32) {
    %c0_i32 = arith.constant 0 : i32
    %c0_i32_0 = arith.constant 0 : i32
    %c0_i32_1 = arith.constant 0 : i32
    return %c0_i32, %c0_i32_0 : i32, i32
  }
  func.func @transform_17(%arg0: i32) -> (i32, i32) {
    %c0_i32 = arith.constant 0 : i32
    %c0_i32_0 = arith.constant 0 : i32
    %c0_i32_1 = arith.constant 0 : i32
    return %c0_i32, %c0_i32_0 : i32, i32
  }
  func.func @transform_18(%arg0: i32) -> (i32, i32) {
    %c0_i32 = arith.constant 0 : i32
    %c0_i32_0 = arith.constant 0 : i32
    %c0_i32_1 = arith.constant 0 : i32
    return %c0_i32, %c0_i32_0 : i32, i32
  }
  func.func @transform_19(%arg0: i32) -> (i32, i32) {
    %c0_i32 = arith.constant 0 : i32
    %c0_i32_0 = arith.constant 0 : i32
    return %arg0, %c0_i32 : i32, i32
  }
}

</mosaic_0001>

<llo_original>
// kernel: model_map_predict_forward.1
$region0: #{model_map_predict_forward.1}
  #allocation0 [shape = 'u32[]', space=smem, size = 0x4, offset = 0x4, fixed_abs, tag = 'smem constant byte address 0x4 - core index']
  #allocation1 [shape = 'u32[144,128]{1,0:T(1,128)}', space=vmem, size = 0x12000, scoped, tag = 'internal scratch']
  %s0 = inlined_call_operand.vmem [shape: f32[16,32], index: 0, kind: input, shape index: {}]
  %s1 = inlined_call_operand.vmem [shape: f32[32,128], index: 1, kind: input, shape index: {}]
  %s2 = inlined_call_operand.vmem [shape: f32[1,128], index: 2, kind: input, shape index: {}]
  %s3 = inlined_call_operand.hbm [shape: f32[128,128], index: 3, kind: input, shape index: {}]
  %s4 = inlined_call_operand.vmem [shape: f32[1,128], index: 4, kind: input, shape index: {}]
  %s5 = inlined_call_operand.hbm [shape: f32[128,128], index: 5, kind: input, shape index: {}]
  %s6 = inlined_call_operand.vmem [shape: f32[1,128], index: 6, kind: input, shape index: {}]
  %s7 = inlined_call_operand.hbm [shape: f32[128,128], index: 7, kind: input, shape index: {}]
  %s8 = inlined_call_operand.vmem [shape: f32[1,128], index: 8, kind: input, shape index: {}]
  %s9 = inlined_call_operand.hbm [shape: f32[128,128], index: 9, kind: input, shape index: {}]
  %s10 = inlined_call_operand.vmem [shape: f32[1,128], index: 10, kind: input, shape index: {}]
  %s11 = inlined_call_operand.hbm [shape: f32[128,128], index: 11, kind: input, shape index: {}]
  %s12 = inlined_call_operand.vmem [shape: f32[1,128], index: 12, kind: input, shape index: {}]
  %s13 = inlined_call_operand.hbm [shape: f32[128,128], index: 13, kind: input, shape index: {}]
  %s14 = inlined_call_operand.vmem [shape: f32[1,128], index: 14, kind: input, shape index: {}]
  %s15 = inlined_call_operand.hbm [shape: f32[128,128], index: 15, kind: input, shape index: {}]
  %s16 = inlined_call_operand.vmem [shape: f32[1,128], index: 16, kind: input, shape index: {}]
  %s17 = inlined_call_operand.hbm [shape: f32[128,256], index: 17, kind: input, shape index: {}]
  %s18 = inlined_call_operand.vmem [shape: f32[1,256], index: 18, kind: input, shape index: {}]
  %s19 = inlined_call_operand.vmem [shape: f32[16,256], index: 19, kind: output, shape index: {}]
  %s20 = sld [smem:[#allocation0]]
  $region118: #{model_map_predict_forward.1} parent=0
    _
  %s22 = ssub.s32 1, %s20
  %s23 = scalar_select 0, %s22, %s20
  $region1: #{model_map_predict_forward.1} parent=0
    #allocation2 [shape = 'u8[65536]{0}', space=vmem, size = 0x10000, scoped, tag = 'input window, operand 3, single buffered']
    #allocation3 [shape = 's32[1]{0}', space=sflag, size = 0x4, scoped, tag = 'scoped memory for model_map_predict_forward.1']
    #allocation4 [shape = 'u8[65536]{0}', space=vmem, size = 0x10000, scoped, tag = 'input window, operand 5, single buffered']
    #allocation5 [shape = 's32[1]{0}', space=sflag, size = 0x4, scoped, tag = 'scoped memory for model_map_predict_forward.1']
    #allocation6 [shape = 'u8[65536]{0}', space=vmem, size = 0x10000, scoped, tag = 'input window, operand 7, single buffered']
    #allocation7 [shape = 'u8[65536]{0}', space=vmem, size = 0x10000, scoped, tag = 'input window, operand 9, single buffered']
    #allocation8 [shape = 's32[1]{0}', space=sflag, size = 0x4, scoped, tag = 'scoped memory for model_map_predict_forward.1']
    #allocation9 [shape = 'u8[65536]{0}', space=vmem, size = 0x10000, scoped, tag = 'input window, operand 11, single buffered']
    #allocation10 [shape = 'u8[65536]{0}', space=vmem, size = 0x10000, scoped, tag = 'input window, operand 13, single buffered']
    #allocation11 [shape = 's32[1]{0}', space=sflag, size = 0x4, scoped, tag = 'scoped memory for model_map_predict_forward.1']
    #allocation12 [shape = 'u8[65536]{0}', space=vmem, size = 0x10000, scoped, tag = 'input window, operand 15, single buffered']
    #allocation13 [shape = 'u8[131072]{0}', space=vmem, size = 0x20000, scoped, tag = 'input window, operand 17, single buffered']
    #allocation14 [shape = 's32[1]{0}', space=sflag, size = 0x4, scoped, tag = 'scoped memory for model_map_predict_forward.1']
    %24 = vsyncpa [#allocation3], 0
    %25 = vsyncpa [#allocation5], 0
    %26 = vsyncpa [#allocation8], 0
    %27 = vsyncpa [#allocation11], 0
    %28 = vsyncpa [#allocation14], 0
    // Predicated region
    $region2: #{model_map_predict_forward.1} parent=1 // pred_check
      _
    $region3: #{model_map_predict_forward.1} parent=1 // pred_check_branch
      %30 = sbr.rel (0) target = $region5
    $region4: #{model_map_predict_forward.1} parent=1 // pred_region
      _
    $region5: #{model_map_predict_forward.1} parent=1 // pred_fallthru
      _
    // Predicated region
    $region6: #{model_map_predict_forward.1} parent=1 // pred_check
      _
    $region7: #{model_map_predict_forward.1} parent=1 // pred_check_branch
      %32 = sbr.rel (0) target = $region9
    $region8: #{model_map_predict_forward.1} parent=1 // pred_region
      _
    $region9: #{model_map_predict_forward.1} parent=1 // pred_fallthru
      _
    // Predicated region
    $region10: #{model_map_predict_forward.1} parent=1 // pred_check
      _
    $region11: #{model_map_predict_forward.1} parent=1 // pred_check_branch
      %34 = sbr.rel (0) target = $region13
    $region12: #{model_map_predict_forward.1} parent=1 // pred_region
      _
    $region13: #{model_map_predict_forward.1} parent=1 // pred_fallthru
      _
    // Predicated region
    $region14: #{model_map_predict_forward.1} parent=1 // pred_check
      _
    $region15: #{model_map_predict_forward.1} parent=1 // pred_check_branch
      %36 = sbr.rel (0) target = $region17
    $region16: #{model_map_predict_forward.1} parent=1 // pred_region
      %s38 = ssub.s32 2048, 2048
      %39 = vsyncadd [#allocation3], %s38
      %s40 = sshll.u32 [#allocation2], 4
      %s41 = int_to_ptr.vmem [resolvable:$true] %s40
      %46 = dma.hbm_to_vmem [thread:$0]  %s3, 2048, %s41, [#allocation3], 128, 128, 8
    $region17: #{model_map_predict_forward.1} parent=1 // pred_fallthru
      _
    // Predicated region
    $region18: #{model_map_predict_forward.1} parent=1 // pred_check
      _
    $region19: #{model_map_predict_forward.1} parent=1 // pred_check_branch
      %48 = sbr.rel (0) target = $region21
    $region20: #{model_map_predict_forward.1} parent=1 // pred_region
      _
    $region21: #{model_map_predict_forward.1} parent=1 // pred_fallthru
      _
    // Predicated region
    $region22: #{model_map_predict_forward.1} parent=1 // pred_check
      _
    $region23: #{model_map_predict_forward.1} parent=1 // pred_check_branch
      %50 = sbr.rel (0) target = $region25
    $region24: #{model_map_predict_forward.1} parent=1 // pred_region
      %s52 = ssub.s32 2048, 2048
      %53 = vsyncadd [#allocation5], %s52
      %s54 = sshll.u32 [#allocation4], 4
      %s55 = int_to_ptr.vmem [resolvable:$true] %s54
      %60 = dma.hbm_to_vmem [thread:$0]  %s5, 2048, %s55, [#allocation5], 128, 128, 8
    $region25: #{model_map_predict_forward.1} parent=1 // pred_fallthru
      _
    // Predicated region
    $region26: #{model_map_predict_forward.1} parent=1 // pred_check
      _
    $region27: #{model_map_predict_forward.1} parent=1 // pred_check_branch
      %62 = sbr.rel (0) target = $region29
    $region28: #{model_map_predict_forward.1} parent=1 // pred_region
      _
    $region29: #{model_map_predict_forward.1} parent=1 // pred_fallthru
      _
    // Predicated region
    $region30: #{model_map_predict_forward.1} parent=1 // pred_check
      _
    $region31: #{model_map_predict_forward.1} parent=1 // pred_check_branch
      %64 = sbr.rel (0) target = $region33
    $region32: #{model_map_predict_forward.1} parent=1 // pred_region
      %s66 = ssub.s32 2048, 2048
      %67 = vsyncadd [#allocation5], %s66
      %s68 = sshll.u32 [#allocation6], 4
      %s69 = int_to_ptr.vmem [resolvable:$true] %s68
      %74 = dma.hbm_to_vmem [thread:$0]  %s7, 2048, %s69, [#allocation5], 128, 128, 8
    $region33: #{model_map_predict_forward.1} parent=1 // pred_fallthru
      _
    // Predicated region
    $region34: #{model_map_predict_forward.1} parent=1 // pred_check
      _
    $region35: #{model_map_predict_forward.1} parent=1 // pred_check_branch
      %76 = sbr.rel (0) target = $region37
    $region36: #{model_map_predict_forward.1} parent=1 // pred_region
      _
    $region37: #{model_map_predict_forward.1} parent=1 // pred_fallthru
      _
    // Predicated region
    $region38: #{model_map_predict_forward.1} parent=1 // pred_check
      _
    $region39: #{model_map_predict_forward.1} parent=1 // pred_check_branch
      %78 = sbr.rel (0) target = $region41
    $region40: #{model_map_predict_forward.1} parent=1 // pred_region
      %s80 = ssub.s32 2048, 2048
      %81 = vsyncadd [#allocation8], %s80
      %s82 = sshll.u32 [#allocation7], 4
      %s83 = int_to_ptr.vmem [resolvable:$true] %s82
      %88 = dma.hbm_to_vmem [thread:$0]  %s9, 2048, %s83, [#allocation8], 128, 128, 8
    $region41: #{model_map_predict_forward.1} parent=1 // pred_fallthru
      _
    // Predicated region
    $region42: #{model_map_predict_forward.1} parent=1 // pred_check
      _
    $region43: #{model_map_predict_forward.1} parent=1 // pred_check_branch
      %90 = sbr.rel (0) target = $region45
    $region44: #{model_map_predict_forward.1} parent=1 // pred_region
      _
    $region45: #{model_map_predict_forward.1} parent=1 // pred_fallthru
      _
    // Predicated region
    $region46: #{model_map_predict_forward.1} parent=1 // pred_check
      _
    $region47: #{model_map_predict_forward.1} parent=1 // pred_check_branch
      %92 = sbr.rel (0) target = $region49
    $region48: #{model_map_predict_forward.1} parent=1 // pred_region
      %s94 = ssub.s32 2048, 2048
      %95 = vsyncadd [#allocation8], %s94
      %s96 = sshll.u32 [#allocation9], 4
      %s97 = int_to_ptr.vmem [resolvable:$true] %s96
      %102 = dma.hbm_to_vmem [thread:$0]  %s11, 2048, %s97, [#allocation8], 128, 128, 8
    $region49: #{model_map_predict_forward.1} parent=1 // pred_fallthru
      _
    // Predicated region
    $region50: #{model_map_predict_forward.1} parent=1 // pred_check
      _
    $region51: #{model_map_predict_forward.1} parent=1 // pred_check_branch
      %104 = sbr.rel (0) target = $region53
    $region52: #{model_map_predict_forward.1} parent=1 // pred_region
      _
    $region53: #{model_map_predict_forward.1} parent=1 // pred_fallthru
      _
    // Predicated region
    $region54: #{model_map_predict_forward.1} parent=1 // pred_check
      _
    $region55: #{model_map_predict_forward.1} parent=1 // pred_check_branch
      %106 = sbr.rel (0) target = $region57
    $region56: #{model_map_predict_forward.1} parent=1 // pred_region
      %s108 = ssub.s32 2048, 2048
      %109 = vsyncadd [#allocation11], %s108
      %s110 = sshll.u32 [#allocation10], 4
      %s111 = int_to_ptr.vmem [resolvable:$true] %s110
      %116 = dma.hbm_to_vmem [thread:$0]  %s13, 2048, %s111, [#allocation11], 128, 128, 8
    $region57: #{model_map_predict_forward.1} parent=1 // pred_fallthru
      _
    // Predicated region
    $region58: #{model_map_predict_forward.1} parent=1 // pred_check
      _
    $region59: #{model_map_predict_forward.1} parent=1 // pred_check_branch
      %118 = sbr.rel (0) target = $region61
    $region60: #{model_map_predict_forward.1} parent=1 // pred_region
      _
    $region61: #{model_map_predict_forward.1} parent=1 // pred_fallthru
      _
    // Predicated region
    $region62: #{model_map_predict_forward.1} parent=1 // pred_check
      _
    $region63: #{model_map_predict_forward.1} parent=1 // pred_check_branch
      %120 = sbr.rel (0) target = $region65
    $region64: #{model_map_predict_forward.1} parent=1 // pred_region
      %s122 = ssub.s32 2048, 2048
      %123 = vsyncadd [#allocation11], %s122
      %s124 = sshll.u32 [#allocation12], 4
      %s125 = int_to_ptr.vmem [resolvable:$true] %s124
      %130 = dma.hbm_to_vmem [thread:$0]  %s15, 2048, %s125, [#allocation11], 128, 128, 8
    $region65: #{model_map_predict_forward.1} parent=1 // pred_fallthru
      _
    // Predicated region
    $region66: #{model_map_predict_forward.1} parent=1 // pred_check
      _
    $region67: #{model_map_predict_forward.1} parent=1 // pred_check_branch
      %132 = sbr.rel (0) target = $region69
    $region68: #{model_map_predict_forward.1} parent=1 // pred_region
      _
    $region69: #{model_map_predict_forward.1} parent=1 // pred_fallthru
      _
    // Predicated region
    $region70: #{model_map_predict_forward.1} parent=1 // pred_check
      _
    $region71: #{model_map_predict_forward.1} parent=1 // pred_check_branch
      %134 = sbr.rel (0) target = $region73
    $region72: #{model_map_predict_forward.1} parent=1 // pred_region
      %s136 = ssub.s32 4096, 4096
      %137 = vsyncadd [#allocation14], %s136
      %s138 = sshll.u32 [#allocation13], 4
      %s139 = int_to_ptr.vmem [resolvable:$true] %s138
      %144 = dma.hbm_to_vmem [thread:$0]  %s17, 4096, %s139, [#allocation14], 256, 256, 16
    $region73: #{model_map_predict_forward.1} parent=1 // pred_fallthru
      _
    // Predicated region
    $region74: #{model_map_predict_forward.1} parent=1 // pred_check
      _
    $region75: #{model_map_predict_forward.1} parent=1 // pred_check_branch
      %146 = sbr.rel (0) target = $region77
    $region76: #{model_map_predict_forward.1} parent=1 // pred_region
      _
    $region77: #{model_map_predict_forward.1} parent=1 // pred_fallthru
      _
    // Predicated region
    $region78: #{model_map_predict_forward.1} parent=1 // pred_check
      _
    $region79: #{model_map_predict_forward.1} parent=1 // pred_check_branch
      %148 = sbr.rel (0) target = $region81
    $region80: #{model_map_predict_forward.1} parent=1 // pred_region
      %149 = dma.done [#allocation3], 2048
    $region81: #{model_map_predict_forward.1} parent=1 // pred_fallthru
      _
    // Predicated region
    $region82: #{model_map_predict_forward.1} parent=1 // pred_check
      _
    $region83: #{model_map_predict_forward.1} parent=1 // pred_check_branch
      %151 = sbr.rel (0) target = $region85
    $region84: #{model_map_predict_forward.1} parent=1 // pred_region
      %152 = dma.done [#allocation5], 2048
    $region85: #{model_map_predict_forward.1} parent=1 // pred_fallthru
      _
    // Predicated region
    $region86: #{model_map_predict_forward.1} parent=1 // pred_check
      _
    $region87: #{model_map_predict_forward.1} parent=1 // pred_check_branch
      %154 = sbr.rel (0) target = $region89
    $region88: #{model_map_predict_forward.1} parent=1 // pred_region
      %155 = dma.done [#allocation5], 2048
    $region89: #{model_map_predict_forward.1} parent=1 // pred_fallthru
      _
    // Predicated region
    $region90: #{model_map_predict_forward.1} parent=1 // pred_check
      _
    $region91: #{model_map_predict_forward.1} parent=1 // pred_check_branch
      %157 = sbr.rel (0) target = $region93
    $region92: #{model_map_predict_forward.1} parent=1 // pred_region
      %158 = dma.done [#allocation8], 2048
    $region93: #{model_map_predict_forward.1} parent=1 // pred_fallthru
      _
    // Predicated region
    $region94: #{model_map_predict_forward.1} parent=1 // pred_check
      _
    $region95: #{model_map_predict_forward.1} parent=1 // pred_check_branch
      %160 = sbr.rel (0) target = $region97
    $region96: #{model_map_predict_forward.1} parent=1 // pred_region
      %161 = dma.done [#allocation8], 2048
    $region97: #{model_map_predict_forward.1} parent=1 // pred_fallthru
      _
    // Predicated region
    $region98: #{model_map_predict_forward.1} parent=1 // pred_check
      _
    $region99: #{model_map_predict_forward.1} parent=1 // pred_check_branch
      %163 = sbr.rel (0) target = $region101
    $region100: #{model_map_predict_forward.1} parent=1 // pred_region
      %164 = dma.done [#allocation11], 2048
    $region101: #{model_map_predict_forward.1} parent=1 // pred_fallthru
      _
    // Predicated region
    $region102: #{model_map_predict_forward.1} parent=1 // pred_check
      _
    $region103: #{model_map_predict_forward.1} parent=1 // pred_check_branch
      %166 = sbr.rel (0) target = $region105
    $region104: #{model_map_predict_forward.1} parent=1 // pred_region
      %167 = dma.done [#allocation11], 2048
    $region105: #{model_map_predict_forward.1} parent=1 // pred_fallthru
      _
    // Predicated region
    $region106: #{model_map_predict_forward.1} parent=1 // pred_check
      _
    $region107: #{model_map_predict_forward.1} parent=1 // pred_check_branch
      %169 = sbr.rel (0) target = $region109
    $region108: #{model_map_predict_forward.1} parent=1 // pred_region
      %170 = dma.done [#allocation14], 4096
    $region109: #{model_map_predict_forward.1} parent=1 // pred_fallthru
      _
    %v171 = vld [vmem:[%s0] sm:$0xff]
    %v172 = vld [vmem:[%s0 + $0x8] sm:$0xff]
    %v173 = vld [vmem:[%s1] sm:$0xff]
    %v174 = vld [vmem:[%s1 + $0x8] sm:$0xff]
    %v175 = vld [vmem:[%s1 + $0x10] sm:$0xff]
    %v176 = vld [vmem:[%s1 + $0x18] sm:$0xff]
    %v177 = vld [vmem:[%s2] sm:$0x1]
    %v179 = vlaneseq
    %v180 = vshrl.u32 %v179, 7
    %v181 = vsub.s32 0, %v180
    %v182 = vrot.slane %v177, %v181
    %vm184 = vcmask 261120
    %v186 = vsel %vm184, %v171, 0
    %v189 = vsel %vm184, %v172, 0
    %191 = vmatprep.subr.mxu0 0.0
    %192 = vmatpush1.msra.mxu0 %v173
    %193 = vmatprep.subr.mxu0 0.0
    %194 = vmatpush1.msra.mxu0 %v174
    %195 = vmatprep.subr.mxu0 0.0
    %196 = vmatpush1.msra.mxu0 %v175
    %197 = vmatprep.subr.mxu0 0.0
    %198 = vmatpush1.msra.mxu0 %v176
    %199 = vmatprep.subr.mxu0 0.0
    %200 = vmatpush1.msra.mxu0 0.0
    %201 = vmatprep.subr.mxu0 0.0
    %202 = vmatpush1.msra.mxu0 0.0
    %203 = vmatprep.subr.mxu0 0.0
    %204 = vmatpush1.msra.mxu0 0.0
    %205 = vmatprep.subr.mxu0 0.0
    %206 = vmatpush1.msra.mxu0 0.0
    %207 = vmatprep.subr.mxu0 0.0
    %208 = vmatpush1.msra.mxu0 0.0
    %209 = vmatprep.subr.mxu0 0.0
    %210 = vmatpush1.msra.mxu0 0.0
    %211 = vmatprep.subr.mxu0 0.0
    %212 = vmatpush1.msra.mxu0 0.0
    %213 = vmatprep.subr.mxu0 0.0
    %214 = vmatpush1.msra.mxu0 0.0
    %215 = vmatprep.subr.mxu0 0.0
    %216 = vmatpush1.msra.mxu0 0.0
    %217 = vmatprep.subr.mxu0 0.0
    %218 = vmatpush1.msra.mxu0 0.0
    %219 = vmatprep.subr.mxu0 0.0
    %220 = vmatpush1.msra.mxu0 0.0
    %221 = vmatprep.subr.mxu0 0.0
    %222 = vmatpush1.msra.mxu0 0.0
    %223 = vmatprep.subr.mxu0 0.0
    %224 = vmatpush1.msra.mxu0 0.0
    %225 = vmatprep.subr.mxu0 0.0
    %226 = vmatpush1.msra.mxu0 0.0
    %227 = vmatprep.subr.mxu0 0.0
    %228 = vmatpush1.msra.mxu0 0.0
    %229 = vmatprep.subr.mxu0 0.0
    %230 = vmatpush1.msra.mxu0 0.0
    %231 = vmatprep.subr.mxu0 0.0
    %232 = vmatpush1.msra.mxu0 0.0
    %233 = vmatprep.subr.mxu0 0.0
    %234 = vmatpush1.msra.mxu0 0.0
    %235 = vmatprep.subr.mxu0 0.0
    %236 = vmatpush1.msra.mxu0 0.0
    %237 = vmatprep.subr.mxu0 0.0
    %238 = vmatpush1.msra.mxu0 0.0
    %239 = vmatprep.subr.mxu0 0.0
    %240 = vmatpush1.msra.mxu0 0.0
    %241 = vmatprep.subr.mxu0 0.0
    %242 = vmatpush1.msra.mxu0 0.0
    %243 = vmatprep.subr.mxu0 0.0
    %244 = vmatpush1.msra.mxu0 0.0
    %245 = vmatprep.subr.mxu0 0.0
    %246 = vmatpush1.msra.mxu0 0.0
    %247 = vmatprep.subr.mxu0 0.0
    %248 = vmatpush1.msra.mxu0 0.0
    %249 = vmatprep.subr.mxu0 0.0
    %250 = vmatpush1.msra.mxu0 0.0
    %251 = vmatprep.subr.mxu0 0.0
    %252 = vmatpush1.msra.mxu0 0.0
    %253 = vmatprep.subr.mxu0 0.0
    %254 = vmatpush1.msra.mxu0 0.0
    %255 = vmatprep.mubr.f32.mxu0 0.0
    %256 = vmatmul.mubr.f32.gmra.mrb[0].mxu0 %v186
    %v257 = vpop.f32.mrb[0].mxu0
    %v258 = vadd.f32 %v182, %v257
    %v259 = vpop.f32.mrb[0].mxu0
    %260 = vmatprep.mubr.f32.mxu0 0.0
    %261 = vmatmul.mubr.f32.gmra.mrb[0].mxu0 %v189
    %v262 = vpop.f32.mrb[0].mxu0
    %v263 = vadd.f32 %v182, %v262
    %v264 = vpop.f32.mrb[0].mxu0
    %265 = vdwg.mxu0
    %v266 = vmax.f32 %v258, 0.0
    %v267 = vmax.f32 %v263, 0.0
    %v268 = vld [vmem:[#allocation2] sm:$0xff]
    %v269 = vld [vmem:[#allocation2 + $0x8] sm:$0xff]
    %v270 = vld [vmem:[#allocation2 + $0x10] sm:$0xff]
    %v271 = vld [vmem:[#allocation2 + $0x18] sm:$0xff]
    %v272 = vld [vmem:[#allocation2 + $0x20] sm:$0xff]
    %v273 = vld [vmem:[#allocation2 + $0x28] sm:$0xff]
    %v274 = vld [vmem:[#allocation2 + $0x30] sm:$0xff]
    %v275 = vld [vmem:[#allocation2 + $0x38] sm:$0xff]
    %v276 = vld [vmem:[#allocation2 + $0x40] sm:$0xff]
    %v277 = vld [vmem:[#allocation2 + $0x48] sm:$0xff]
    %v278 = vld [vmem:[#allocation2 + $0x50] sm:$0xff]
    %v279 = vld [vmem:[#allocation2 + $0x58] sm:$0xff]
    %v280 = vld [vmem:[#allocation2 + $0x60] sm:$0xff]
    %v281 = vld [vmem:[#allocation2 + $0x68] sm:$0xff]
    %v282 = vld [vmem:[#allocation2 + $0x70] sm:$0xff]
    %v283 = vld [vmem:[#allocation2 + $0x78] sm:$0xff]
    %v284 = vld [vmem:[%s4] sm:$0x1]
    %v286 = vlaneseq
    %v287 = vshrl.u32 %v286, 7
    %v288 = vsub.s32 0, %v287
    %v289 = vrot.slane %v284, %v288
    %291 = vmatprep.subr.mxu0 0.0
    %292 = vmatpush1.msra.mxu0 %v268
    %293 = vmatprep.subr.mxu0 0.0
    %294 = vmatpush1.msra.mxu0 %v269
    %295 = vmatprep.subr.mxu0 0.0
    %296 = vmatpush1.msra.mxu0 %v270
    %297 = vmatprep.subr.mxu0 0.0
    %298 = vmatpush1.msra.mxu0 %v271
    %299 = vmatprep.subr.mxu0 0.0
    %300 = vmatpush1.msra.mxu0 %v272
    %301 = vmatprep.subr.mxu0 0.0
    %302 = vmatpush1.msra.mxu0 %v273
    %303 = vmatprep.subr.mxu0 0.0
    %304 = vmatpush1.msra.mxu0 %v274
    %305 = vmatprep.subr.mxu0 0.0
    %306 = vmatpush1.msra.mxu0 %v275
    %307 = vmatprep.subr.mxu0 0.0
    %308 = vmatpush1.msra.mxu0 %v276
    %309 = vmatprep.subr.mxu0 0.0
    %310 = vmatpush1.msra.mxu0 %v277
    %311 = vmatprep.subr.mxu0 0.0
    %312 = vmatpush1.msra.mxu0 %v278
    %313 = vmatprep.subr.mxu0 0.0
    %314 = vmatpush1.msra.mxu0 %v279
    %315 = vmatprep.subr.mxu0 0.0
    %316 = vmatpush1.msra.mxu0 %v280
    %317 = vmatprep.subr.mxu0 0.0
    %318 = vmatpush1.msra.mxu0 %v281
    %319 = vmatprep.subr.mxu0 0.0
    %320 = vmatpush1.msra.mxu0 %v282
    %321 = vmatprep.subr.mxu0 0.0
    %322 = vmatpush1.msra.mxu0 %v283
    %323 = vmatprep.subr.mxu0 0.0
    %324 = vmatpush1.msra.mxu0 0.0
    %325 = vmatprep.subr.mxu0 0.0
    %326 = vmatpush1.msra.mxu0 0.0
    %327 = vmatprep.subr.mxu0 0.0
    %328 = vmatpush1.msra.mxu0 0.0
    %329 = vmatprep.subr.mxu0 0.0
    %330 = vmatpush1.msra.mxu0 0.0
    %331 = vmatprep.subr.mxu0 0.0
    %332 = vmatpush1.msra.mxu0 0.0
    %333 = vmatprep.subr.mxu0 0.0
    %334 = vmatpush1.msra.mxu0 0.0
    %335 = vmatprep.subr.mxu0 0.0
    %336 = vmatpush1.msra.mxu0 0.0
    %337 = vmatprep.subr.mxu0 0.0
    %338 = vmatpush1.msra.mxu0 0.0
    %339 = vmatprep.subr.mxu0 0.0
    %340 = vmatpush1.msra.mxu0 0.0
    %341 = vmatprep.subr.mxu0 0.0
    %342 = vmatpush1.msra.mxu0 0.0
    %343 = vmatprep.subr.mxu0 0.0
    %344 = vmatpush1.msra.mxu0 0.0
    %345 = vmatprep.subr.mxu0 0.0
    %346 = vmatpush1.msra.mxu0 0.0
    %347 = vmatprep.subr.mxu0 0.0
    %348 = vmatpush1.msra.mxu0 0.0
    %349 = vmatprep.subr.mxu0 0.0
    %350 = vmatpush1.msra.mxu0 0.0
    %351 = vmatprep.subr.mxu0 0.0
    %352 = vmatpush1.msra.mxu0 0.0
    %353 = vmatprep.subr.mxu0 0.0
    %354 = vmatpush1.msra.mxu0 0.0
    %355 = vmatprep.mubr.f32.mxu0 0.0
    %356 = vmatmul.mubr.f32.gmra.mrb[0].mxu0 %v266
    %v357 = vpop.f32.mrb[0].mxu0
    %v358 = vadd.f32 %v289, %v357
    %v359 = vpop.f32.mrb[0].mxu0
    %360 = vmatprep.mubr.f32.mxu0 0.0
    %361 = vmatmul.mubr.f32.gmra.mrb[0].mxu0 %v267
    %v362 = vpop.f32.mrb[0].mxu0
    %v363 = vadd.f32 %v289, %v362
    %v364 = vpop.f32.mrb[0].mxu0
    %365 = vdwg.mxu0
    %v366 = vmax.f32 %v358, 0.0
    %v367 = vmax.f32 %v363, 0.0
    %v368 = vld [vmem:[#allocation4] sm:$0xff]
    %v369 = vld [vmem:[#allocation4 + $0x8] sm:$0xff]
    %v370 = vld [vmem:[#allocation4 + $0x10] sm:$0xff]
    %v371 = vld [vmem:[#allocation4 + $0x18] sm:$0xff]
    %v372 = vld [vmem:[#allocation4 + $0x20] sm:$0xff]
    %v373 = vld [vmem:[#allocation4 + $0x28] sm:$0xff]
    %v374 = vld [vmem:[#allocation4 + $0x30] sm:$0xff]
    %v375 = vld [vmem:[#allocation4 + $0x38] sm:$0xff]
    %v376 = vld [vmem:[#allocation4 + $0x40] sm:$0xff]
    %v377 = vld [vmem:[#allocation4 + $0x48] sm:$0xff]
    %v378 = vld [vmem:[#allocation4 + $0x50] sm:$0xff]
    %v379 = vld [vmem:[#allocation4 + $0x58] sm:$0xff]
    %v380 = vld [vmem:[#allocation4 + $0x60] sm:$0xff]
    %v381 = vld [vmem:[#allocation4 + $0x68] sm:$0xff]
    %v382 = vld [vmem:[#allocation4 + $0x70] sm:$0xff]
    %v383 = vld [vmem:[#allocation4 + $0x78] sm:$0xff]
    %v384 = vld [vmem:[%s6] sm:$0x1]
    %v386 = vlaneseq
    %v387 = vshrl.u32 %v386, 7
    %v388 = vsub.s32 0, %v387
    %v389 = vrot.slane %v384, %v388
    %391 = vmatprep.subr.mxu0 0.0
    %392 = vmatpush1.msra.mxu0 %v368
    %393 = vmatprep.subr.mxu0 0.0
    %394 = vmatpush1.msra.mxu0 %v369
    %395 = vmatprep.subr.mxu0 0.0
    %396 = vmatpush1.msra.mxu0 %v370
    %397 = vmatprep.subr.mxu0 0.0
    %398 = vmatpush1.msra.mxu0 %v371
    %399 = vmatprep.subr.mxu0 0.0
    %400 = vmatpush1.msra.mxu0 %v372
    %401 = vmatprep.subr.mxu0 0.0
    %402 = vmatpush1.msra.mxu0 %v373
    %403 = vmatprep.subr.mxu0 0.0
    %404 = vmatpush1.msra.mxu0 %v374
    %405 = vmatprep.subr.mxu0 0.0
    %406 = vmatpush1.msra.mxu0 %v375
    %407 = vmatprep.subr.mxu0 0.0
    %408 = vmatpush1.msra.mxu0 %v376
    %409 = vmatprep.subr.mxu0 0.0
    %410 = vmatpush1.msra.mxu0 %v377
    %411 = vmatprep.subr.mxu0 0.0
    %412 = vmatpush1.msra.mxu0 %v378
    %413 = vmatprep.subr.mxu0 0.0
    %414 = vmatpush1.msra.mxu0 %v379
    %415 = vmatprep.subr.mxu0 0.0
    %416 = vmatpush1.msra.mxu0 %v380
    %417 = vmatprep.subr.mxu0 0.0
    %418 = vmatpush1.msra.mxu0 %v381
    %419 = vmatprep.subr.mxu0 0.0
    %420 = vmatpush1.msra.mxu0 %v382
    %421 = vmatprep.subr.mxu0 0.0
    %422 = vmatpush1.msra.mxu0 %v383
    %423 = vmatprep.subr.mxu0 0.0
    %424 = vmatpush1.msra.mxu0 0.0
    %425 = vmatprep.subr.mxu0 0.0
    %426 = vmatpush1.msra.mxu0 0.0
    %427 = vmatprep.subr.mxu0 0.0
    %428 = vmatpush1.msra.mxu0 0.0
    %429 = vmatprep.subr.mxu0 0.0
    %430 = vmatpush1.msra.mxu0 0.0
    %431 = vmatprep.subr.mxu0 0.0
    %432 = vmatpush1.msra.mxu0 0.0
    %433 = vmatprep.subr.mxu0 0.0
    %434 = vmatpush1.msra.mxu0 0.0
    %435 = vmatprep.subr.mxu0 0.0
    %436 = vmatpush1.msra.mxu0 0.0
    %437 = vmatprep.subr.mxu0 0.0
    %438 = vmatpush1.msra.mxu0 0.0
    %439 = vmatprep.subr.mxu0 0.0
    %440 = vmatpush1.msra.mxu0 0.0
    %441 = vmatprep.subr.mxu0 0.0
    %442 = vmatpush1.msra.mxu0 0.0
    %443 = vmatprep.subr.mxu0 0.0
    %444 = vmatpush1.msra.mxu0 0.0
    %445 = vmatprep.subr.mxu0 0.0
    %446 = vmatpush1.msra.mxu0 0.0
    %447 = vmatprep.subr.mxu0 0.0
    %448 = vmatpush1.msra.mxu0 0.0
    %449 = vmatprep.subr.mxu0 0.0
    %450 = vmatpush1.msra.mxu0 0.0
    %451 = vmatprep.subr.mxu0 0.0
    %452 = vmatpush1.msra.mxu0 0.0
    %453 = vmatprep.subr.mxu0 0.0
    %454 = vmatpush1.msra.mxu0 0.0
    %455 = vmatprep.mubr.f32.mxu0 0.0
    %456 = vmatmul.mubr.f32.gmra.mrb[0].mxu0 %v366
    %v457 = vpop.f32.mrb[0].mxu0
    %v458 = vadd.f32 %v389, %v457
    %v459 = vpop.f32.mrb[0].mxu0
    %460 = vmatprep.mubr.f32.mxu0 0.0
    %461 = vmatmul.mubr.f32.gmra.mrb[0].mxu0 %v367
    %v462 = vpop.f32.mrb[0].mxu0
    %v463 = vadd.f32 %v389, %v462
    %v464 = vpop.f32.mrb[0].mxu0
    %465 = vdwg.mxu0
    %v466 = vmax.f32 %v458, 0.0
    %v467 = vmax.f32 %v463, 0.0
    %v468 = vld [vmem:[#allocation6] sm:$0xff]
    %v469 = vld [vmem:[#allocation6 + $0x8] sm:$0xff]
    %v470 = vld [vmem:[#allocation6 + $0x10] sm:$0xff]
    %v471 = vld [vmem:[#allocation6 + $0x18] sm:$0xff]
    %v472 = vld [vmem:[#allocation6 + $0x20] sm:$0xff]
    %v473 = vld [vmem:[#allocation6 + $0x28] sm:$0xff]
    %v474 = vld [vmem:[#allocation6 + $0x30] sm:$0xff]
    %v475 = vld [vmem:[#allocation6 + $0x38] sm:$0xff]
    %v476 = vld [vmem:[#allocation6 + $0x40] sm:$0xff]
    %v477 = vld [vmem:[#allocation6 + $0x48] sm:$0xff]
    %v478 = vld [vmem:[#allocation6 + $0x50] sm:$0xff]
    %v479 = vld [vmem:[#allocation6 + $0x58] sm:$0xff]
    %v480 = vld [vmem:[#allocation6 + $0x60] sm:$0xff]
    %v481 = vld [vmem:[#allocation6 + $0x68] sm:$0xff]
    %v482 = vld [vmem:[#allocation6 + $0x70] sm:$0xff]
    %v483 = vld [vmem:[#allocation6 + $0x78] sm:$0xff]
    %v484 = vld [vmem:[%s8] sm:$0x1]
    %v486 = vlaneseq
    %v487 = vshrl.u32 %v486, 7
    %v488 = vsub.s32 0, %v487
    %v489 = vrot.slane %v484, %v488
    %491 = vmatprep.subr.mxu0 0.0
    %492 = vmatpush1.msra.mxu0 %v468
    %493 = vmatprep.subr.mxu0 0.0
    %494 = vmatpush1.msra.mxu0 %v469
    %495 = vmatprep.subr.mxu0 0.0
    %496 = vmatpush1.msra.mxu0 %v470
    %497 = vmatprep.subr.mxu0 0.0
    %498 = vmatpush1.msra.mxu0 %v471
    %499 = vmatprep.subr.mxu0 0.0
    %500 = vmatpush1.msra.mxu0 %v472
    %501 = vmatprep.subr.mxu0 0.0
    %502 = vmatpush1.msra.mxu0 %v473
    %503 = vmatprep.subr.mxu0 0.0
    %504 = vmatpush1.msra.mxu0 %v474
    %505 = vmatprep.subr.mxu0 0.0
    %506 = vmatpush1.msra.mxu0 %v475
    %507 = vmatprep.subr.mxu0 0.0
    %508 = vmatpush1.msra.mxu0 %v476
    %509 = vmatprep.subr.mxu0 0.0
    %510 = vmatpush1.msra.mxu0 %v477
    %511 = vmatprep.subr.mxu0 0.0
    %512 = vmatpush1.msra.mxu0 %v478
    %513 = vmatprep.subr.mxu0 0.0
    %514 = vmatpush1.msra.mxu0 %v479
    %515 = vmatprep.subr.mxu0 0.0
    %516 = vmatpush1.msra.mxu0 %v480
    %517 = vmatprep.subr.mxu0 0.0
    %518 = vmatpush1.msra.mxu0 %v481
    %519 = vmatprep.subr.mxu0 0.0
    %520 = vmatpush1.msra.mxu0 %v482
    %521 = vmatprep.subr.mxu0 0.0
    %522 = vmatpush1.msra.mxu0 %v483
    %523 = vmatprep.subr.mxu0 0.0
    %524 = vmatpush1.msra.mxu0 0.0
    %525 = vmatprep.subr.mxu0 0.0
    %526 = vmatpush1.msra.mxu0 0.0
    %527 = vmatprep.subr.mxu0 0.0
    %528 = vmatpush1.msra.mxu0 0.0
    %529 = vmatprep.subr.mxu0 0.0
    %530 = vmatpush1.msra.mxu0 0.0
    %531 = vmatprep.subr.mxu0 0.0
    %532 = vmatpush1.msra.mxu0 0.0
    %533 = vmatprep.subr.mxu0 0.0
    %534 = vmatpush1.msra.mxu0 0.0
    %535 = vmatprep.subr.mxu0 0.0
    %536 = vmatpush1.msra.mxu0 0.0
    %537 = vmatprep.subr.mxu0 0.0
    %538 = vmatpush1.msra.mxu0 0.0
    %539 = vmatprep.subr.mxu0 0.0
    %540 = vmatpush1.msra.mxu0 0.0
    %541 = vmatprep.subr.mxu0 0.0
    %542 = vmatpush1.msra.mxu0 0.0
    %543 = vmatprep.subr.mxu0 0.0
    %544 = vmatpush1.msra.mxu0 0.0
    %545 = vmatprep.subr.mxu0 0.0
    %546 = vmatpush1.msra.mxu0 0.0
    %547 = vmatprep.subr.mxu0 0.0
    %548 = vmatpush1.msra.mxu0 0.0
    %549 = vmatprep.subr.mxu0 0.0
    %550 = vmatpush1.msra.mxu0 0.0
    %551 = vmatprep.subr.mxu0 0.0
    %552 = vmatpush1.msra.mxu0 0.0
    %553 = vmatprep.subr.mxu0 0.0
    %554 = vmatpush1.msra.mxu0 0.0
    %555 = vmatprep.mubr.f32.mxu0 0.0
    %556 = vmatmul.mubr.f32.gmra.mrb[0].mxu0 %v466
    %v557 = vpop.f32.mrb[0].mxu0
    %v558 = vadd.f32 %v489, %v557
    %v559 = vpop.f32.mrb[0].mxu0
    %560 = vmatprep.mubr.f32.mxu0 0.0
    %561 = vmatmul.mubr.f32.gmra.mrb[0].mxu0 %v467
    %v562 = vpop.f32.mrb[0].mxu0
    %v563 = vadd.f32 %v489, %v562
    %v564 = vpop.f32.mrb[0].mxu0
    %565 = vdwg.mxu0
    %v566 = vmax.f32 %v558, 0.0
    %v567 = vmax.f32 %v563, 0.0
    %v568 = vadd.f32 %v566, %v266
    %v569 = vadd.f32 %v567, %v267
    %v570 = vld [vmem:[#allocation7] sm:$0xff]
    %v571 = vld [vmem:[#allocation7 + $0x8] sm:$0xff]
    %v572 = vld [vmem:[#allocation7 + $0x10] sm:$0xff]
    %v573 = vld [vmem:[#allocation7 + $0x18] sm:$0xff]
    %v574 = vld [vmem:[#allocation7 + $0x20] sm:$0xff]
    %v575 = vld [vmem:[#allocation7 + $0x28] sm:$0xff]
    %v576 = vld [vmem:[#allocation7 + $0x30] sm:$0xff]
    %v577 = vld [vmem:[#allocation7 + $0x38] sm:$0xff]
    %v578 = vld [vmem:[#allocation7 + $0x40] sm:$0xff]
    %v579 = vld [vmem:[#allocation7 + $0x48] sm:$0xff]
    %v580 = vld [vmem:[#allocation7 + $0x50] sm:$0xff]
    %v581 = vld [vmem:[#allocation7 + $0x58] sm:$0xff]
    %v582 = vld [vmem:[#allocation7 + $0x60] sm:$0xff]
    %v583 = vld [vmem:[#allocation7 + $0x68] sm:$0xff]
    %v584 = vld [vmem:[#allocation7 + $0x70] sm:$0xff]
    %v585 = vld [vmem:[#allocation7 + $0x78] sm:$0xff]
    %v586 = vld [vmem:[%s10] sm:$0x1]
    %v588 = vlaneseq
    %v589 = vshrl.u32 %v588, 7
    %v590 = vsub.s32 0, %v589
    %v591 = vrot.slane %v586, %v590
    %593 = vmatprep.subr.mxu0 0.0
    %594 = vmatpush1.msra.mxu0 %v570
    %595 = vmatprep.subr.mxu0 0.0
    %596 = vmatpush1.msra.mxu0 %v571
    %597 = vmatprep.subr.mxu0 0.0
    %598 = vmatpush1.msra.mxu0 %v572
    %599 = vmatprep.subr.mxu0 0.0
    %600 = vmatpush1.msra.mxu0 %v573
    %601 = vmatprep.subr.mxu0 0.0
    %602 = vmatpush1.msra.mxu0 %v574
    %603 = vmatprep.subr.mxu0 0.0
    %604 = vmatpush1.msra.mxu0 %v575
    %605 = vmatprep.subr.mxu0 0.0
    %606 = vmatpush1.msra.mxu0 %v576
    %607 = vmatprep.subr.mxu0 0.0
    %608 = vmatpush1.msra.mxu0 %v577
    %609 = vmatprep.subr.mxu0 0.0
    %610 = vmatpush1.msra.mxu0 %v578
    %611 = vmatprep.subr.mxu0 0.0
    %612 = vmatpush1.msra.mxu0 %v579
    %613 = vmatprep.subr.mxu0 0.0
    %614 = vmatpush1.msra.mxu0 %v580
    %615 = vmatprep.subr.mxu0 0.0
    %616 = vmatpush1.msra.mxu0 %v581
    %617 = vmatprep.subr.mxu0 0.0
    %618 = vmatpush1.msra.mxu0 %v582
    %619 = vmatprep.subr.mxu0 0.0
    %620 = vmatpush1.msra.mxu0 %v583
    %621 = vmatprep.subr.mxu0 0.0
    %622 = vmatpush1.msra.mxu0 %v584
    %623 = vmatprep.subr.mxu0 0.0
    %624 = vmatpush1.msra.mxu0 %v585
    %625 = vmatprep.subr.mxu0 0.0
    %626 = vmatpush1.msra.mxu0 0.0
    %627 = vmatprep.subr.mxu0 0.0
    %628 = vmatpush1.msra.mxu0 0.0
    %629 = vmatprep.subr.mxu0 0.0
    %630 = vmatpush1.msra.mxu0 0.0
    %631 = vmatprep.subr.mxu0 0.0
    %632 = vmatpush1.msra.mxu0 0.0
    %633 = vmatprep.subr.mxu0 0.0
    %634 = vmatpush1.msra.mxu0 0.0
    %635 = vmatprep.subr.mxu0 0.0
    %636 = vmatpush1.msra.mxu0 0.0
    %637 = vmatprep.subr.mxu0 0.0
    %638 = vmatpush1.msra.mxu0 0.0
    %639 = vmatprep.subr.mxu0 0.0
    %640 = vmatpush1.msra.mxu0 0.0
    %641 = vmatprep.subr.mxu0 0.0
    %642 = vmatpush1.msra.mxu0 0.0
    %643 = vmatprep.subr.mxu0 0.0
    %644 = vmatpush1.msra.mxu0 0.0
    %645 = vmatprep.subr.mxu0 0.0
    %646 = vmatpush1.msra.mxu0 0.0
    %647 = vmatprep.subr.mxu0 0.0
    %648 = vmatpush1.msra.mxu0 0.0
    %649 = vmatprep.subr.mxu0 0.0
    %650 = vmatpush1.msra.mxu0 0.0
    %651 = vmatprep.subr.mxu0 0.0
    %652 = vmatpush1.msra.mxu0 0.0
    %653 = vmatprep.subr.mxu0 0.0
    %654 = vmatpush1.msra.mxu0 0.0
    %655 = vmatprep.subr.mxu0 0.0
    %656 = vmatpush1.msra.mxu0 0.0
    %657 = vmatprep.mubr.f32.mxu0 0.0
    %658 = vmatmul.mubr.f32.gmra.mrb[0].mxu0 %v568
    %v659 = vpop.f32.mrb[0].mxu0
    %v660 = vadd.f32 %v591, %v659
    %v661 = vpop.f32.mrb[0].mxu0
    %662 = vmatprep.mubr.f32.mxu0 0.0
    %663 = vmatmul.mubr.f32.gmra.mrb[0].mxu0 %v569
    %v664 = vpop.f32.mrb[0].mxu0
    %v665 = vadd.f32 %v591, %v664
    %v666 = vpop.f32.mrb[0].mxu0
    %667 = vdwg.mxu0
    %v668 = vmax.f32 %v660, 0.0
    %v669 = vmax.f32 %v665, 0.0
    %v670 = vld [vmem:[#allocation9] sm:$0xff]
    %v671 = vld [vmem:[#allocation9 + $0x8] sm:$0xff]
    %v672 = vld [vmem:[#allocation9 + $0x10] sm:$0xff]
    %v673 = vld [vmem:[#allocation9 + $0x18] sm:$0xff]
    %v674 = vld [vmem:[#allocation9 + $0x20] sm:$0xff]
    %v675 = vld [vmem:[#allocation9 + $0x28] sm:$0xff]
    %v676 = vld [vmem:[#allocation9 + $0x30] sm:$0xff]
    %v677 = vld [vmem:[#allocation9 + $0x38] sm:$0xff]
    %v678 = vld [vmem:[#allocation9 + $0x40] sm:$0xff]
    %v679 = vld [vmem:[#allocation9 + $0x48] sm:$0xff]
    %v680 = vld [vmem:[#allocation9 + $0x50] sm:$0xff]
    %v681 = vld [vmem:[#allocation9 + $0x58] sm:$0xff]
    %v682 = vld [vmem:[#allocation9 + $0x60] sm:$0xff]
    %v683 = vld [vmem:[#allocation9 + $0x68] sm:$0xff]
    %v684 = vld [vmem:[#allocation9 + $0x70] sm:$0xff]
    %v685 = vld [vmem:[#allocation9 + $0x78] sm:$0xff]
    %v686 = vld [vmem:[%s12] sm:$0x1]
    %v688 = vlaneseq
    %v689 = vshrl.u32 %v688, 7
    %v690 = vsub.s32 0, %v689
    %v691 = vrot.slane %v686, %v690
    %693 = vmatprep.subr.mxu0 0.0
    %694 = vmatpush1.msra.mxu0 %v670
    %695 = vmatprep.subr.mxu0 0.0
    %696 = vmatpush1.msra.mxu0 %v671
    %697 = vmatprep.subr.mxu0 0.0
    %698 = vmatpush1.msra.mxu0 %v672
    %699 = vmatprep.subr.mxu0 0.0
    %700 = vmatpush1.msra.mxu0 %v673
    %701 = vmatprep.subr.mxu0 0.0
    %702 = vmatpush1.msra.mxu0 %v674
    %703 = vmatprep.subr.mxu0 0.0
    %704 = vmatpush1.msra.mxu0 %v675
    %705 = vmatprep.subr.mxu0 0.0
    %706 = vmatpush1.msra.mxu0 %v676
    %707 = vmatprep.subr.mxu0 0.0
    %708 = vmatpush1.msra.mxu0 %v677
    %709 = vmatprep.subr.mxu0 0.0
    %710 = vmatpush1.msra.mxu0 %v678
    %711 = vmatprep.subr.mxu0 0.0
    %712 = vmatpush1.msra.mxu0 %v679
    %713 = vmatprep.subr.mxu0 0.0
    %714 = vmatpush1.msra.mxu0 %v680
    %715 = vmatprep.subr.mxu0 0.0
    %716 = vmatpush1.msra.mxu0 %v681
    %717 = vmatprep.subr.mxu0 0.0
    %718 = vmatpush1.msra.mxu0 %v682
    %719 = vmatprep.subr.mxu0 0.0
    %720 = vmatpush1.msra.mxu0 %v683
    %721 = vmatprep.subr.mxu0 0.0
    %722 = vmatpush1.msra.mxu0 %v684
    %723 = vmatprep.subr.mxu0 0.0
    %724 = vmatpush1.msra.mxu0 %v685
    %725 = vmatprep.subr.mxu0 0.0
    %726 = vmatpush1.msra.mxu0 0.0
    %727 = vmatprep.subr.mxu0 0.0
    %728 = vmatpush1.msra.mxu0 0.0
    %729 = vmatprep.subr.mxu0 0.0
    %730 = vmatpush1.msra.mxu0 0.0
    %731 = vmatprep.subr.mxu0 0.0
    %732 = vmatpush1.msra.mxu0 0.0
    %733 = vmatprep.subr.mxu0 0.0
    %734 = vmatpush1.msra.mxu0 0.0
    %735 = vmatprep.subr.mxu0 0.0
    %736 = vmatpush1.msra.mxu0 0.0
    %737 = vmatprep.subr.mxu0 0.0
    %738 = vmatpush1.msra.mxu0 0.0
    %739 = vmatprep.subr.mxu0 0.0
    %740 = vmatpush1.msra.mxu0 0.0
    %741 = vmatprep.subr.mxu0 0.0
    %742 = vmatpush1.msra.mxu0 0.0
    %743 = vmatprep.subr.mxu0 0.0
    %744 = vmatpush1.msra.mxu0 0.0
    %745 = vmatprep.subr.mxu0 0.0
    %746 = vmatpush1.msra.mxu0 0.0
    %747 = vmatprep.subr.mxu0 0.0
    %748 = vmatpush1.msra.mxu0 0.0
    %749 = vmatprep.subr.mxu0 0.0
    %750 = vmatpush1.msra.mxu0 0.0
    %751 = vmatprep.subr.mxu0 0.0
    %752 = vmatpush1.msra.mxu0 0.0
    %753 = vmatprep.subr.mxu0 0.0
    %754 = vmatpush1.msra.mxu0 0.0
    %755 = vmatprep.subr.mxu0 0.0
    %756 = vmatpush1.msra.mxu0 0.0
    %757 = vmatprep.mubr.f32.mxu0 0.0
    %758 = vmatmul.mubr.f32.gmra.mrb[0].mxu0 %v668
    %v759 = vpop.f32.mrb[0].mxu0
    %v760 = vadd.f32 %v691, %v759
    %v761 = vpop.f32.mrb[0].mxu0
    %762 = vmatprep.mubr.f32.mxu0 0.0
    %763 = vmatmul.mubr.f32.gmra.mrb[0].mxu0 %v669
    %v764 = vpop.f32.mrb[0].mxu0
    %v765 = vadd.f32 %v691, %v764
    %v766 = vpop.f32.mrb[0].mxu0
    %767 = vdwg.mxu0
    %v768 = vmax.f32 %v760, 0.0
    %v769 = vmax.f32 %v765, 0.0
    %v770 = vld [vmem:[#allocation10] sm:$0xff]
    %v771 = vld [vmem:[#allocation10 + $0x8] sm:$0xff]
    %v772 = vld [vmem:[#allocation10 + $0x10] sm:$0xff]
    %v773 = vld [vmem:[#allocation10 + $0x18] sm:$0xff]
    %v774 = vld [vmem:[#allocation10 + $0x20] sm:$0xff]
    %v775 = vld [vmem:[#allocation10 + $0x28] sm:$0xff]
    %v776 = vld [vmem:[#allocation10 + $0x30] sm:$0xff]
    %v777 = vld [vmem:[#allocation10 + $0x38] sm:$0xff]
    %v778 = vld [vmem:[#allocation10 + $0x40] sm:$0xff]
    %v779 = vld [vmem:[#allocation10 + $0x48] sm:$0xff]
    %v780 = vld [vmem:[#allocation10 + $0x50] sm:$0xff]
    %v781 = vld [vmem:[#allocation10 + $0x58] sm:$0xff]
    %v782 = vld [vmem:[#allocation10 + $0x60] sm:$0xff]
    %v783 = vld [vmem:[#allocation10 + $0x68] sm:$0xff]
    %v784 = vld [vmem:[#allocation10 + $0x70] sm:$0xff]
    %v785 = vld [vmem:[#allocation10 + $0x78] sm:$0xff]
    %v786 = vld [vmem:[%s14] sm:$0x1]
    %v788 = vlaneseq
    %v789 = vshrl.u32 %v788, 7
    %v790 = vsub.s32 0, %v789
    %v791 = vrot.slane %v786, %v790
    %793 = vmatprep.subr.mxu0 0.0
    %794 = vmatpush1.msra.mxu0 %v770
    %795 = vmatprep.subr.mxu0 0.0
    %796 = vmatpush1.msra.mxu0 %v771
    %797 = vmatprep.subr.mxu0 0.0
    %798 = vmatpush1.msra.mxu0 %v772
    %799 = vmatprep.subr.mxu0 0.0
    %800 = vmatpush1.msra.mxu0 %v773
    %801 = vmatprep.subr.mxu0 0.0
    %802 = vmatpush1.msra.mxu0 %v774
    %803 = vmatprep.subr.mxu0 0.0
    %804 = vmatpush1.msra.mxu0 %v775
    %805 = vmatprep.subr.mxu0 0.0
    %806 = vmatpush1.msra.mxu0 %v776
    %807 = vmatprep.subr.mxu0 0.0
    %808 = vmatpush1.msra.mxu0 %v777
    %809 = vmatprep.subr.mxu0 0.0
    %810 = vmatpush1.msra.mxu0 %v778
    %811 = vmatprep.subr.mxu0 0.0
    %812 = vmatpush1.msra.mxu0 %v779
    %813 = vmatprep.subr.mxu0 0.0
    %814 = vmatpush1.msra.mxu0 %v780
    %815 = vmatprep.subr.mxu0 0.0
    %816 = vmatpush1.msra.mxu0 %v781
    %817 = vmatprep.subr.mxu0 0.0
    %818 = vmatpush1.msra.mxu0 %v782
    %819 = vmatprep.subr.mxu0 0.0
    %820 = vmatpush1.msra.mxu0 %v783
    %821 = vmatprep.subr.mxu0 0.0
    %822 = vmatpush1.msra.mxu0 %v784
    %823 = vmatprep.subr.mxu0 0.0
    %824 = vmatpush1.msra.mxu0 %v785
    %825 = vmatprep.subr.mxu0 0.0
    %826 = vmatpush1.msra.mxu0 0.0
    %827 = vmatprep.subr.mxu0 0.0
    %828 = vmatpush1.msra.mxu0 0.0
    %829 = vmatprep.subr.mxu0 0.0
    %830 = vmatpush1.msra.mxu0 0.0
    %831 = vmatprep.subr.mxu0 0.0
    %832 = vmatpush1.msra.mxu0 0.0
    %833 = vmatprep.subr.mxu0 0.0
    %834 = vmatpush1.msra.mxu0 0.0
    %835 = vmatprep.subr.mxu0 0.0
    %836 = vmatpush1.msra.mxu0 0.0
    %837 = vmatprep.subr.mxu0 0.0
    %838 = vmatpush1.msra.mxu0 0.0
    %839 = vmatprep.subr.mxu0 0.0
    %840 = vmatpush1.msra.mxu0 0.0
    %841 = vmatprep.subr.mxu0 0.0
    %842 = vmatpush1.msra.mxu0 0.0
    %843 = vmatprep.subr.mxu0 0.0
    %844 = vmatpush1.msra.mxu0 0.0
    %845 = vmatprep.subr.mxu0 0.0
    %846 = vmatpush1.msra.mxu0 0.0
    %847 = vmatprep.subr.mxu0 0.0
    %848 = vmatpush1.msra.mxu0 0.0
    %849 = vmatprep.subr.mxu0 0.0
    %850 = vmatpush1.msra.mxu0 0.0
    %851 = vmatprep.subr.mxu0 0.0
    %852 = vmatpush1.msra.mxu0 0.0
    %853 = vmatprep.subr.mxu0 0.0
    %854 = vmatpush1.msra.mxu0 0.0
    %855 = vmatprep.subr.mxu0 0.0
    %856 = vmatpush1.msra.mxu0 0.0
    %857 = vmatprep.mubr.f32.mxu0 0.0
    %858 = vmatmul.mubr.f32.gmra.mrb[0].mxu0 %v768
    %v859 = vpop.f32.mrb[0].mxu0
    %v860 = vadd.f32 %v791, %v859
    %v861 = vpop.f32.mrb[0].mxu0
    %862 = vmatprep.mubr.f32.mxu0 0.0
    %863 = vmatmul.mubr.f32.gmra.mrb[0].mxu0 %v769
    %v864 = vpop.f32.mrb[0].mxu0
    %v865 = vadd.f32 %v791, %v864
    %v866 = vpop.f32.mrb[0].mxu0
    %867 = vdwg.mxu0
    %v868 = vmax.f32 %v860, 0.0
    %v869 = vmax.f32 %v865, 0.0
    %v870 = vld [vmem:[#allocation12] sm:$0xff]
    %v871 = vld [vmem:[#allocation12 + $0x8] sm:$0xff]
    %v872 = vld [vmem:[#allocation12 + $0x10] sm:$0xff]
    %v873 = vld [vmem:[#allocation12 + $0x18] sm:$0xff]
    %v874 = vld [vmem:[#allocation12 + $0x20] sm:$0xff]
    %v875 = vld [vmem:[#allocation12 + $0x28] sm:$0xff]
    %v876 = vld [vmem:[#allocation12 + $0x30] sm:$0xff]
    %v877 = vld [vmem:[#allocation12 + $0x38] sm:$0xff]
    %v878 = vld [vmem:[#allocation12 + $0x40] sm:$0xff]
    %v879 = vld [vmem:[#allocation12 + $0x48] sm:$0xff]
    %v880 = vld [vmem:[#allocation12 + $0x50] sm:$0xff]
    %v881 = vld [vmem:[#allocation12 + $0x58] sm:$0xff]
    %v882 = vld [vmem:[#allocation12 + $0x60] sm:$0xff]
    %v883 = vld [vmem:[#allocation12 + $0x68] sm:$0xff]
    %v884 = vld [vmem:[#allocation12 + $0x70] sm:$0xff]
    %v885 = vld [vmem:[#allocation12 + $0x78] sm:$0xff]
    %v886 = vld [vmem:[%s16] sm:$0x1]
    %v888 = vlaneseq
    %v889 = vshrl.u32 %v888, 7
    %v890 = vsub.s32 0, %v889
    %v891 = vrot.slane %v886, %v890
    %893 = vmatprep.subr.mxu0 0.0
    %894 = vmatpush1.msra.mxu0 %v870
    %895 = vmatprep.subr.mxu0 0.0
    %896 = vmatpush1.msra.mxu0 %v871
    %897 = vmatprep.subr.mxu0 0.0
    %898 = vmatpush1.msra.mxu0 %v872
    %899 = vmatprep.subr.mxu0 0.0
    %900 = vmatpush1.msra.mxu0 %v873
    %901 = vmatprep.subr.mxu0 0.0
    %902 = vmatpush1.msra.mxu0 %v874
    %903 = vmatprep.subr.mxu0 0.0
    %904 = vmatpush1.msra.mxu0 %v875
    %905 = vmatprep.subr.mxu0 0.0
    %906 = vmatpush1.msra.mxu0 %v876
    %907 = vmatprep.subr.mxu0 0.0
    %908 = vmatpush1.msra.mxu0 %v877
    %909 = vmatprep.subr.mxu0 0.0
    %910 = vmatpush1.msra.mxu0 %v878
    %911 = vmatprep.subr.mxu0 0.0
    %912 = vmatpush1.msra.mxu0 %v879
    %913 = vmatprep.subr.mxu0 0.0
    %914 = vmatpush1.msra.mxu0 %v880
    %915 = vmatprep.subr.mxu0 0.0
    %916 = vmatpush1.msra.mxu0 %v881
    %917 = vmatprep.subr.mxu0 0.0
    %918 = vmatpush1.msra.mxu0 %v882
    %919 = vmatprep.subr.mxu0 0.0
    %920 = vmatpush1.msra.mxu0 %v883
    %921 = vmatprep.subr.mxu0 0.0
    %922 = vmatpush1.msra.mxu0 %v884
    %923 = vmatprep.subr.mxu0 0.0
    %924 = vmatpush1.msra.mxu0 %v885
    %925 = vmatprep.subr.mxu0 0.0
    %926 = vmatpush1.msra.mxu0 0.0
    %927 = vmatprep.subr.mxu0 0.0
    %928 = vmatpush1.msra.mxu0 0.0
    %929 = vmatprep.subr.mxu0 0.0
    %930 = vmatpush1.msra.mxu0 0.0
    %931 = vmatprep.subr.mxu0 0.0
    %932 = vmatpush1.msra.mxu0 0.0
    %933 = vmatprep.subr.mxu0 0.0
    %934 = vmatpush1.msra.mxu0 0.0
    %935 = vmatprep.subr.mxu0 0.0
    %936 = vmatpush1.msra.mxu0 0.0
    %937 = vmatprep.subr.mxu0 0.0
    %938 = vmatpush1.msra.mxu0 0.0
    %939 = vmatprep.subr.mxu0 0.0
    %940 = vmatpush1.msra.mxu0 0.0
    %941 = vmatprep.subr.mxu0 0.0
    %942 = vmatpush1.msra.mxu0 0.0
    %943 = vmatprep.subr.mxu0 0.0
    %944 = vmatpush1.msra.mxu0 0.0
    %945 = vmatprep.subr.mxu0 0.0
    %946 = vmatpush1.msra.mxu0 0.0
    %947 = vmatprep.subr.mxu0 0.0
    %948 = vmatpush1.msra.mxu0 0.0
    %949 = vmatprep.subr.mxu0 0.0
    %950 = vmatpush1.msra.mxu0 0.0
    %951 = vmatprep.subr.mxu0 0.0
    %952 = vmatpush1.msra.mxu0 0.0
    %953 = vmatprep.subr.mxu0 0.0
    %954 = vmatpush1.msra.mxu0 0.0
    %955 = vmatprep.subr.mxu0 0.0
    %956 = vmatpush1.msra.mxu0 0.0
    %957 = vmatprep.mubr.f32.mxu0 0.0
    %958 = vmatmul.mubr.f32.gmra.mrb[0].mxu0 %v868
    %v959 = vpop.f32.mrb[0].mxu0
    %v960 = vadd.f32 %v891, %v959
    %v961 = vpop.f32.mrb[0].mxu0
    %962 = vmatprep.mubr.f32.mxu0 0.0
    %963 = vmatmul.mubr.f32.gmra.mrb[0].mxu0 %v869
    %v964 = vpop.f32.mrb[0].mxu0
    %v965 = vadd.f32 %v891, %v964
    %v966 = vpop.f32.mrb[0].mxu0
    %967 = vdwg.mxu0
    %v968 = vmax.f32 %v960, 0.0
    %v969 = vmax.f32 %v965, 0.0
    %v970 = vadd.f32 %v968, %v668
    %v971 = vadd.f32 %v969, %v669
    %v972 = vld [vmem:[#allocation13] sm:$0xff]
    %v973 = vld [vmem:[#allocation13 + $0x8] sm:$0xff]
    %v974 = vld [vmem:[#allocation13 + $0x10] sm:$0xff]
    %v975 = vld [vmem:[#allocation13 + $0x18] sm:$0xff]
    %v976 = vld [vmem:[#allocation13 + $0x20] sm:$0xff]
    %v977 = vld [vmem:[#allocation13 + $0x28] sm:$0xff]
    %v978 = vld [vmem:[#allocation13 + $0x30] sm:$0xff]
    %v979 = vld [vmem:[#allocation13 + $0x38] sm:$0xff]
    %v980 = vld [vmem:[#allocation13 + $0x40] sm:$0xff]
    %v981 = vld [vmem:[#allocation13 + $0x48] sm:$0xff]
    %v982 = vld [vmem:[#allocation13 + $0x50] sm:$0xff]
    %v983 = vld [vmem:[#allocation13 + $0x58] sm:$0xff]
    %v984 = vld [vmem:[#allocation13 + $0x60] sm:$0xff]
    %v985 = vld [vmem:[#allocation13 + $0x68] sm:$0xff]
    %v986 = vld [vmem:[#allocation13 + $0x70] sm:$0xff]
    %v987 = vld [vmem:[#allocation13 + $0x78] sm:$0xff]
    %v988 = vld [vmem:[#allocation13 + $0x80] sm:$0xff]
    %v989 = vld [vmem:[#allocation13 + $0x88] sm:$0xff]
    %v990 = vld [vmem:[#allocation13 + $0x90] sm:$0xff]
    %v991 = vld [vmem:[#allocation13 + $0x98] sm:$0xff]
    %v992 = vld [vmem:[#allocation13 + $0xa0] sm:$0xff]
    %v993 = vld [vmem:[#allocation13 + $0xa8] sm:$0xff]
    %v994 = vld [vmem:[#allocation13 + $0xb0] sm:$0xff]
    %v995 = vld [vmem:[#allocation13 + $0xb8] sm:$0xff]
    %v996 = vld [vmem:[#allocation13 + $0xc0] sm:$0xff]
    %v997 = vld [vmem:[#allocation13 + $0xc8] sm:$0xff]
    %v998 = vld [vmem:[#allocation13 + $0xd0] sm:$0xff]
    %v999 = vld [vmem:[#allocation13 + $0xd8] sm:$0xff]
    %v1000 = vld [vmem:[#allocation13 + $0xe0] sm:$0xff]
    %v1001 = vld [vmem:[#allocation13 + $0xe8] sm:$0xff]
    %v1002 = vld [vmem:[#allocation13 + $0xf0] sm:$0xff]
    %v1003 = vld [vmem:[#allocation13 + $0xf8] sm:$0xff]
    %v1004 = vld [vmem:[%s18] sm:$0x3]
    %v1006 = vlaneseq
    %v1007 = vshrl.u32 %v1006, 7
    %v1008 = vsub.s32 0, %v1007
    %v1009 = vrot.slane %v1004, %v1008
    %v1010 = vlaneseq
    %v1011 = vshrl.u32 %v1010, 7
    %v1012 = vsub.s32 1, %v1011
    %v1013 = vrot.slane %v1004, %v1012
    %1016 = vmatprep.subr.mxu0 %v973
    %1017 = vmatpush1.msra.mxu0 %v972
    %1018 = vmatprep.subr.mxu0 %v975
    %1019 = vmatpush1.msra.mxu0 %v974
    %1020 = vmatprep.subr.mxu0 %v977
    %1021 = vmatpush1.msra.mxu0 %v976
    %1022 = vmatprep.subr.mxu0 %v979
    %1023 = vmatpush1.msra.mxu0 %v978
    %1024 = vmatprep.subr.mxu0 %v981
    %1025 = vmatpush1.msra.mxu0 %v980
    %1026 = vmatprep.subr.mxu0 %v983
    %1027 = vmatpush1.msra.mxu0 %v982
    %1028 = vmatprep.subr.mxu0 %v985
    %1029 = vmatpush1.msra.mxu0 %v984
    %1030 = vmatprep.subr.mxu0 %v987
    %1031 = vmatpush1.msra.mxu0 %v986
    %1032 = vmatprep.subr.mxu0 %v989
    %1033 = vmatpush1.msra.mxu0 %v988
    %1034 = vmatprep.subr.mxu0 %v991
    %1035 = vmatpush1.msra.mxu0 %v990
    %1036 = vmatprep.subr.mxu0 %v993
    %1037 = vmatpush1.msra.mxu0 %v992
    %1038 = vmatprep.subr.mxu0 %v995
    %1039 = vmatpush1.msra.mxu0 %v994
    %1040 = vmatprep.subr.mxu0 %v997
    %1041 = vmatpush1.msra.mxu0 %v996
    %1042 = vmatprep.subr.mxu0 %v999
    %1043 = vmatpush1.msra.mxu0 %v998
    %1044 = vmatprep.subr.mxu0 %v1001
    %1045 = vmatpush1.msra.mxu0 %v1000
    %1046 = vmatprep.subr.mxu0 %v1003
    %1047 = vmatpush1.msra.mxu0 %v1002
    %1048 = vmatprep.subr.mxu0 0.0
    %1049 = vmatpush1.msra.mxu0 0.0
    %1050 = vmatprep.subr.mxu0 0.0
    %1051 = vmatpush1.msra.mxu0 0.0
    %1052 = vmatprep.subr.mxu0 0.0
    %1053 = vmatpush1.msra.mxu0 0.0
    %1054 = vmatprep.subr.mxu0 0.0
    %1055 = vmatpush1.msra.mxu0 0.0
    %1056 = vmatprep.subr.mxu0 0.0
    %1057 = vmatpush1.msra.mxu0 0.0
    %1058 = vmatprep.subr.mxu0 0.0
    %1059 = vmatpush1.msra.mxu0 0.0
    %1060 = vmatprep.subr.mxu0 0.0
    %1061 = vmatpush1.msra.mxu0 0.0
    %1062 = vmatprep.subr.mxu0 0.0
    %1063 = vmatpush1.msra.mxu0 0.0
    %1064 = vmatprep.subr.mxu0 0.0
    %1065 = vmatpush1.msra.mxu0 0.0
    %1066 = vmatprep.subr.mxu0 0.0
    %1067 = vmatpush1.msra.mxu0 0.0
    %1068 = vmatprep.subr.mxu0 0.0
    %1069 = vmatpush1.msra.mxu0 0.0
    %1070 = vmatprep.subr.mxu0 0.0
    %1071 = vmatpush1.msra.mxu0 0.0
    %1072 = vmatprep.subr.mxu0 0.0
    %1073 = vmatpush1.msra.mxu0 0.0
    %1074 = vmatprep.subr.mxu0 0.0
    %1075 = vmatpush1.msra.mxu0 0.0
    %1076 = vmatprep.subr.mxu0 0.0
    %1077 = vmatpush1.msra.mxu0 0.0
    %1078 = vmatprep.subr.mxu0 0.0
    %1079 = vmatpush1.msra.mxu0 0.0
    %1080 = vmatprep.mubr.f32.mxu0 0.0
    %1081 = vmatmul.mubr.f32.gmra.mrb[0].mxu0 %v970
    %v1082 = vpop.f32.mrb[0].mxu0
    %v1083 = vadd.f32 %v1009, %v1082
    %v1084 = vpop.f32.mrb[0].mxu0
    %v1085 = vadd.f32 %v1013, %v1084
    %1086 = vmatprep.mubr.f32.mxu0 0.0
    %1087 = vmatmul.mubr.f32.gmra.mrb[0].mxu0 %v971
    %v1088 = vpop.f32.mrb[0].mxu0
    %v1089 = vadd.f32 %v1009, %v1088
    %v1090 = vpop.f32.mrb[0].mxu0
    %v1091 = vadd.f32 %v1013, %v1090
    %1092 = vdwg.mxu0
    %v1093 = vmax.f32 %v1083, 0.0
    %v1094 = vmax.f32 %v1085, 0.0
    %v1095 = vmax.f32 %v1089, 0.0
    %v1096 = vmax.f32 %v1091, 0.0
    %1097 = vst [vmem:[%s19] sm:$0xff] %v1093
    %1098 = vst [vmem:[%s19 + $0x8] sm:$0xff] %v1094
    %1099 = vst [vmem:[%s19 + $0x10] sm:$0xff] %v1095
    %1100 = vst [vmem:[%s19 + $0x18] sm:$0xff] %v1096
    // Predicated region
    $region110: #{model_map_predict_forward.1} parent=1 // pred_check
      _
    $region111: #{model_map_predict_forward.1} parent=1 // pred_check_branch
      %1102 = sbr.rel (0) target = $region113
    $region112: #{model_map_predict_forward.1} parent=1 // pred_region
      _
    $region113: #{model_map_predict_forward.1} parent=1 // pred_fallthru
      _
    // Predicated region
    $region114: #{model_map_predict_forward.1} parent=1 // pred_check
      _
    $region115: #{model_map_predict_forward.1} parent=1 // pred_check_branch
      %1104 = sbr.rel (0) target = $region117
    $region116: #{model_map_predict_forward.1} parent=1 // pred_region
      _
    $region117: #{model_map_predict_forward.1} parent=1 // pred_fallthru
      _
    %1105 = vsyncpa [#allocation3], 1
    %1106 = vsyncpa [#allocation5], 1
    %1107 = vsyncpa [#allocation8], 1
    %1108 = vsyncpa [#allocation11], 1
    %1109 = vsyncpa [#allocation14], 1

</llo_original>
